<compile_context>
chip_gen: v6e
topology: v6e:2x2x1
jax: 0.10.0
libtpu: 0.0.40
codegen_flags: <defaults>
</compile_context>

<pallas_src>
import functools
import math

import jax
import jax.numpy as jnp
from jax.experimental import pallas as pl
from jax.experimental.pallas import tpu as pltpu


# --------------------------------------------------------------------------
# Fused SodiumPostnet Pallas kernel
# --------------------------------------------------------------------------

def _pitch_postnet_kernel(x_ref, w_ref, scale_ref, shift_ref, o_ref, buf_ref):
    """Fused stack of same-padded stride-1 Conv1d layers (+ BN-eval + tanh).

    x_ref     : (B, S, C)      embedded pitches, channels-last
    w_ref     : (L, K*C, C)    im2col-reshaped conv weights (tap-major rows)
    scale_ref : (L, C)         folded BN scale  (ones for the last layer)
    shift_ref : (L, C)         folded BN shift + bias*scale (bias for last)
    o_ref     : (B, S, C)
    buf_ref   : (B, S+2P, C)   VMEM scratch holding padded activations
    """
    B, S, C = x_ref.shape
    L, KC, _ = w_ref.shape
    K = KC // C
    P = (K - 1) // 2
    N = B * S

    # Zero the conv halo once (it is never written again); load the input
    # into the interior.  Everything below stays VMEM-resident.
    halo = jnp.zeros((B, P, C), jnp.float32)
    buf_ref[:, 0:P, :] = halo
    buf_ref[:, P + S:P + S + P, :] = halo
    buf_ref[:, P:P + S, :] = x_ref[...].astype(jnp.float32)

    scales = scale_ref[...]                    # (L, C)
    shifts = shift_ref[...]                    # (L, C)

    for l in range(L):                         # static layer loop (L = 3)
        # im2col: tap-major / channel-minor columns to match weight layout.
        cols = [buf_ref[:, t:t + S, :].reshape(N, C) for t in range(K)]
        im2col = jnp.concatenate(cols, axis=-1)            # (N, K*C)
        acc = jnp.dot(im2col, w_ref[l],                     # (N, C), lane-dense
                      preferred_element_type=jnp.float32)
        # Folded epilogue: conv bias + eval-mode BatchNorm1d (scale/shift).
        acc = acc * scales[l][None, :] + shifts[l][None, :]
        if l < L - 1:
            acc = jnp.tanh(acc)                             # EUP slot
            buf_ref[:, P:P + S, :] = acc.reshape(B, S, C)   # next layer's input
        else:
            o_ref[...] = acc.reshape(B, S, C).astype(o_ref.dtype)


def pitch_postnet(x, w_stack, scale_stack, shift_stack):
    """x: (B, S, C) float32 channels-last.  One fused pallas_call, no batch grid."""
    B, S, C = x.shape
    L, KC, _ = w_stack.shape
    K = KC // C
    P = (K - 1) // 2
    return pl.pallas_call(
        _pitch_postnet_kernel,
        out_shape=jax.ShapeDtypeStruct((B, S, C), jnp.float32),
        grid=(1,),
        in_specs=[
            pl.BlockSpec((B, S, C), lambda i: (0, 0, 0)),
            pl.BlockSpec((L, KC, C), lambda i: (0, 0, 0)),
            pl.BlockSpec((L, C), lambda i: (0, 0)),
            pl.BlockSpec((L, C), lambda i: (0, 0)),
        ],
        out_specs=pl.BlockSpec((B, S, C), lambda i: (0, 0, 0)),
        scratch_shapes=[pltpu.VMEM((B, S + 2 * P, C), jnp.float32)],
        compiler_params=pltpu.CompilerParams(
            dimension_semantics=("arbitrary",)),
    )(x, w_stack, scale_stack, shift_stack)


# --------------------------------------------------------------------------
# Frozen formant pitch-embedding (pure JAX, init time) — mirrors
# SodiumPitchPredictor._compute_formants + torchaudio MelScale (htk, norm=None)
# --------------------------------------------------------------------------

def _hz_to_mel(f):
    return 2595.0 * jnp.log10(1.0 + f / 700.0)


def _mel_to_hz(m):
    return 700.0 * (10.0 ** (m / 2595.0) - 1.0)


def _melscale_fbanks(n_freqs, f_min, f_max, n_mels, sample_rate):
    all_freqs = jnp.linspace(0.0, sample_rate // 2, n_freqs)
    m_pts = jnp.linspace(_hz_to_mel(jnp.float32(f_min)),
                         _hz_to_mel(jnp.float32(f_max)), n_mels + 2)
    f_pts = _mel_to_hz(m_pts)
    f_diff = f_pts[1:] - f_pts[:-1]
    slopes = f_pts[None, :] - all_freqs[:, None]
    down = (-1.0 * slopes[:, :-2]) / f_diff[:-1]
    up = slopes[:, 2:] / f_diff[1:]
    return jnp.maximum(0.0, jnp.minimum(down, up))          # (n_freqs, n_mels)


def compute_formants(num_notes, num_harmonics, n_fft, sample_rate, n_mels,
                     concert_pitch=440.0, concert_a=69):
    response_field = jnp.linspace(0.0, sample_rate // 2, n_fft)          # (n_fft,)
    freqs = concert_pitch * 2.0 ** (
        (jnp.arange(num_notes, dtype=jnp.float32) - concert_a) / 12.0)   # (notes,)
    harms = freqs[:, None] * jnp.arange(
        1, num_harmonics + 1, dtype=jnp.float32)[None, :]                # (notes, H)
    half_w = (jnp.arange(1, num_notes + 1, dtype=jnp.float32) / 2.0)[:, None, None]
    resp_w = 1.0 / jnp.arange(1, num_harmonics + 1, dtype=jnp.float32) ** 2
    d = jnp.abs(response_field[None, :, None] - harms[:, None, :])       # (notes, n_fft, H)
    tri = jnp.where(d < half_w, 1.0 - d / half_w, 0.0)
    responses = jnp.sum(tri * resp_w[None, None, :], axis=-1)            # (notes, n_fft)
    fb = _melscale_fbanks(n_fft, 0.0, sample_rate // 2, n_mels, sample_rate)
    mel = responses @ fb                                                  # (notes, n_mels)
    mel = mel.at[:, 0].set(0.0)           # `mel_responses[0] = 0` (first mel bin)
    return jnp.log(jnp.clip(mel, 1e-5))                                   # (notes, n_mels)


# --------------------------------------------------------------------------
# Parameters + forward
# --------------------------------------------------------------------------

def init_params(key, *, num_notes, n_mels, num_convolutions, kernel_size,
                n_fft, sample_rate, num_harmonics):
    emb = compute_formants(num_notes, num_harmonics, n_fft, sample_rate, n_mels)

    # TODO(synk): BatchNorm1d applied with eval-mode running statistics
    # (PyTorch defaults gamma=1, beta=0, mean=0, var=1); training-mode batch
    # statistics are not implemented.
    eps = 1e-5
    ws, scales, shifts = [], [], []
    for i in range(num_convolutions):
        key, kw, kb = jax.random.split(key, 3)
        # init_uniform: nn.init.uniform_(-0.1, 0.1) on Conv1d weight & bias.
        w = jax.random.uniform(kw, (n_mels, n_mels, kernel_size), jnp.float32,
                               -0.1, 0.1)                      # torch (Cout, Cin, K)
        b = jax.random.uniform(kb, (n_mels,), jnp.float32, -0.1, 0.1)
        if i != num_convolutions - 1:
            gamma = jnp.ones((n_mels,), jnp.float32)
            beta = jnp.zeros((n_mels,), jnp.float32)
            r_mean = jnp.zeros((n_mels,), jnp.float32)
            r_var = jnp.ones((n_mels,), jnp.float32)
            scale = gamma / jnp.sqrt(r_var + eps)
            shift = beta - r_mean * scale + b * scale          # conv bias folded in
        else:
            scale = jnp.ones((n_mels,), jnp.float32)
            shift = b                                          # last layer: bias only
        # im2col weight layout: rows tap-major / channel-minor, cols = Cout.
        wk = jnp.transpose(w, (2, 1, 0)).reshape(kernel_size * n_mels, n_mels)
        ws.append(wk)
        scales.append(scale)
        shifts.append(shift)
    return {
        "emb": emb,                       # frozen formant pitch embedding
        "w": jnp.stack(ws),               # (L, K*C, C)
        "scale": jnp.stack(scales),       # (L, C)
        "shift": jnp.stack(shifts),       # (L, C)
    }


def sodium_pitch_predictor_forward(params, pitches):
    """pitches: (seq, batch) int32 -> (seq, batch, n_mels) float32."""
    # Embedding lookup directly in channels-last (B, S, C) layout.
    x = params["emb"][pitches.T].astype(jnp.float32)           # (B, S, C)
    y = pitch_postnet(x, params["w"], params["scale"], params["shift"])  # (B, S, C)
    return jnp.transpose(y, (1, 0, 2))                         # (S, B, C)


# --------------------------------------------------------------------------

if __name__ == "__main__":
    S, B = 16, 2
    cfg = dict(num_notes=32, n_mels=128, num_convolutions=3, kernel_size=5,
               n_fft=256, sample_rate=16000, num_harmonics=32)

    key = jax.random.PRNGKey(0)
    kp, kx = jax.random.split(key)
    params = init_params(kp, **cfg)
    pitches = jax.random.randint(kx, (S, B), 0, cfg["num_notes"], dtype=jnp.int32)

    fwd = jax.jit(functools.partial(sodium_pitch_predictor_forward, params))
    out = jax.block_until_ready(fwd(pitches))

    assert out.shape == (S, B, cfg["n_mels"]), out.shape
    assert bool(jnp.all(jnp.isfinite(out)))
    print("KERNEL_OK")
</pallas_src>

<mosaic_0001>
module attributes {stable_mosaic.version = 11 : i64} {
  func.func @_pitch_postnet_kernel(%arg0: i32, %arg1: memref<2x16x128xf32, #tpu.memory_space<vmem>>, %arg2: memref<3x640x128xf32, #tpu.memory_space<vmem>>, %arg3: memref<3x128xf32, #tpu.memory_space<vmem>>, %arg4: memref<3x128xf32, #tpu.memory_space<vmem>>, %arg5: memref<2x16x128xf32, #tpu.memory_space<vmem>>, %arg6: memref<2x20x128xf32, #tpu.memory_space<vmem>>) attributes {dimension_semantics = [#tpu.dimension_semantics<arbitrary>], iteration_bounds = array<i64: 1>, scalar_prefetch = 0 : i64, scratch_operands = 1 : i64, tpu.core_type = #tpu.core_type<tc>, window_params = [{pipeline_mode = #tpu.pipeline_mode<synchronous>, transform_indices = @transform_0, window_bounds = array<i64: 2, 16, 128>}, {pipeline_mode = #tpu.pipeline_mode<synchronous>, transform_indices = @transform_1, window_bounds = array<i64: 3, 640, 128>}, {pipeline_mode = #tpu.pipeline_mode<synchronous>, transform_indices = @transform_2, window_bounds = array<i64: 3, 128>}, {pipeline_mode = #tpu.pipeline_mode<synchronous>, transform_indices = @transform_3, window_bounds = array<i64: 3, 128>}, {pipeline_mode = #tpu.pipeline_mode<synchronous>, transform_indices = @transform_4, window_bounds = array<i64: 2, 16, 128>}]} {
    %cst = arith.constant 0.000000e+00 : f32
    %0 = vector.broadcast %cst : f32 to vector<2x2x128xf32>
    %c0 = arith.constant 0 : index
    %c0_0 = arith.constant 0 : index
    %c0_1 = arith.constant 0 : index
    %1 = vector.load %arg6[%c0, %c0_0, %c0_1] : memref<2x20x128xf32, #tpu.memory_space<vmem>>, vector<2x2x128xf32>
    tpu.vector_store %arg6[%c0, %c0_0, %c0_1], %0 {strides = array<i32>} : memref<2x20x128xf32, #tpu.memory_space<vmem>>, vector<2x2x128xf32>,
    %c0_2 = arith.constant 0 : index
    %c18 = arith.constant 18 : index
    %c0_3 = arith.constant 0 : index
    %2 = vector.load %arg6[%c0_2, %c18, %c0_3] : memref<2x20x128xf32, #tpu.memory_space<vmem>>, vector<2x2x128xf32>
    tpu.vector_store %arg6[%c0_2, %c18, %c0_3], %0 {strides = array<i32>} : memref<2x20x128xf32, #tpu.memory_space<vmem>>, vector<2x2x128xf32>,
    %c0_4 = arith.constant 0 : index
    %c0_5 = arith.constant 0 : index
    %c0_6 = arith.constant 0 : index
    %3 = vector.load %arg1[%c0_4, %c0_5, %c0_6] : memref<2x16x128xf32, #tpu.memory_space<vmem>>, vector<2x16x128xf32>
    %c0_7 = arith.constant 0 : index
    %c2 = arith.constant 2 : index
    %c0_8 = arith.constant 0 : index
    %4 = vector.load %arg6[%c0_7, %c2, %c0_8] : memref<2x20x128xf32, #tpu.memory_space<vmem>>, vector<2x16x128xf32>
    tpu.vector_store %arg6[%c0_7, %c2, %c0_8], %3 {strides = array<i32>} : memref<2x20x128xf32, #tpu.memory_space<vmem>>, vector<2x16x128xf32>,
    %c0_9 = arith.constant 0 : index
    %c0_10 = arith.constant 0 : index
    %5 = vector.load %arg3[%c0_9, %c0_10] : memref<3x128xf32, #tpu.memory_space<vmem>>, vector<3x128xf32>
    %c0_11 = arith.constant 0 : index
    %c0_12 = arith.constant 0 : index
    %6 = vector.load %arg4[%c0_11, %c0_12] : memref<3x128xf32, #tpu.memory_space<vmem>>, vector<3x128xf32>
    %c0_13 = arith.constant 0 : index
    %c0_14 = arith.constant 0 : index
    %c0_15 = arith.constant 0 : index
    %7 = vector.load %arg6[%c0_13, %c0_14, %c0_15] : memref<2x20x128xf32, #tpu.memory_space<vmem>>, vector<2x16x128xf32>
    %8 = vector.shape_cast %7 : vector<2x16x128xf32> to vector<32x128xf32>
    %c0_16 = arith.constant 0 : index
    %c1 = arith.constant 1 : index
    %c0_17 = arith.constant 0 : index
    %9 = vector.load %arg6[%c0_16, %c1, %c0_17] : memref<2x20x128xf32, #tpu.memory_space<vmem>>, vector<2x16x128xf32>
    %10 = vector.shape_cast %9 : vector<2x16x128xf32> to vector<32x128xf32>
    %c0_18 = arith.constant 0 : index
    %c2_19 = arith.constant 2 : index
    %c0_20 = arith.constant 0 : index
    %11 = vector.load %arg6[%c0_18, %c2_19, %c0_20] : memref<2x20x128xf32, #tpu.memory_space<vmem>>, vector<2x16x128xf32>
    %12 = vector.shape_cast %11 : vector<2x16x128xf32> to vector<32x128xf32>
    %c0_21 = arith.constant 0 : index
    %c3 = arith.constant 3 : index
    %c0_22 = arith.constant 0 : index
    %13 = vector.load %arg6[%c0_21, %c3, %c0_22] : memref<2x20x128xf32, #tpu.memory_space<vmem>>, vector<2x16x128xf32>
    %14 = vector.shape_cast %13 : vector<2x16x128xf32> to vector<32x128xf32>
    %c0_23 = arith.constant 0 : index
    %c4 = arith.constant 4 : index
    %c0_24 = arith.constant 0 : index
    %15 = vector.load %arg6[%c0_23, %c4, %c0_24] : memref<2x20x128xf32, #tpu.memory_space<vmem>>, vector<2x16x128xf32>
    %16 = vector.shape_cast %15 : vector<2x16x128xf32> to vector<32x128xf32>
    %17 = tpu.concatenate %8, %10, %12, %14, %16 in 1 : vector<32x128xf32>, vector<32x128xf32>, vector<32x128xf32>, vector<32x128xf32>, vector<32x128xf32> -> vector<32x640xf32>
    %c0_25 = arith.constant 0 : index
    %c0_26 = arith.constant 0 : index
    %c0_27 = arith.constant 0 : index
    %18 = vector.load %arg2[%c0_25, %c0_26, %c0_27] : memref<3x640x128xf32, #tpu.memory_space<vmem>>, vector<1x640x128xf32>
    %19 = vector.shape_cast %18 : vector<1x640x128xf32> to vector<640x128xf32>
    %cst_28 = arith.constant dense<0.000000e+00> : vector<32x128xf32>
    %20 = tpu.matmul %17, %19, %cst_28 {dimension_numbers = #tpu.dot_dimension_numbers<[1], [0], [0], [1], [0, 0, 1, 1], [], []>} : vector<32x640xf32>, vector<640x128xf32>, vector<32x128xf32> -> vector<32x128xf32>
    %21 = vector.extract_strided_slice %5 {offsets = [0, 0], sizes = [1, 128], strides = [1, 1]} : vector<3x128xf32> to vector<1x128xf32>
    %22 = vector.shape_cast %21 : vector<1x128xf32> to vector<128xf32>
    %23 = vector.shape_cast %22 : vector<128xf32> to vector<1x128xf32>
    %24 = vector.broadcast %23 : vector<1x128xf32> to vector<32x128xf32>
    %25 = arith.mulf %20, %24 : vector<32x128xf32>
    %26 = vector.extract_strided_slice %6 {offsets = [0, 0], sizes = [1, 128], strides = [1, 1]} : vector<3x128xf32> to vector<1x128xf32>
    %27 = vector.shape_cast %26 : vector<1x128xf32> to vector<128xf32>
    %28 = vector.shape_cast %27 : vector<128xf32> to vector<1x128xf32>
    %29 = vector.broadcast %28 : vector<1x128xf32> to vector<32x128xf32>
    %30 = arith.addf %25, %29 : vector<32x128xf32>
    %31 = math.tanh %30 : vector<32x128xf32>
    %32 = vector.shape_cast %31 : vector<32x128xf32> to vector<2x16x128xf32>
    %c0_29 = arith.constant 0 : index
    %c2_30 = arith.constant 2 : index
    %c0_31 = arith.constant 0 : index
    %33 = vector.load %arg6[%c0_29, %c2_30, %c0_31] : memref<2x20x128xf32, #tpu.memory_space<vmem>>, vector<2x16x128xf32>
    tpu.vector_store %arg6[%c0_29, %c2_30, %c0_31], %32 {strides = array<i32>} : memref<2x20x128xf32, #tpu.memory_space<vmem>>, vector<2x16x128xf32>,
    %c0_32 = arith.constant 0 : index
    %c0_33 = arith.constant 0 : index
    %c0_34 = arith.constant 0 : index
    %34 = vector.load %arg6[%c0_32, %c0_33, %c0_34] : memref<2x20x128xf32, #tpu.memory_space<vmem>>, vector<2x16x128xf32>
    %35 = vector.shape_cast %34 : vector<2x16x128xf32> to vector<32x128xf32>
    %c0_35 = arith.constant 0 : index
    %c1_36 = arith.constant 1 : index
    %c0_37 = arith.constant 0 : index
    %36 = vector.load %arg6[%c0_35, %c1_36, %c0_37] : memref<2x20x128xf32, #tpu.memory_space<vmem>>, vector<2x16x128xf32>
    %37 = vector.shape_cast %36 : vector<2x16x128xf32> to vector<32x128xf32>
    %c0_38 = arith.constant 0 : index
    %c2_39 = arith.constant 2 : index
    %c0_40 = arith.constant 0 : index
    %38 = vector.load %arg6[%c0_38, %c2_39, %c0_40] : memref<2x20x128xf32, #tpu.memory_space<vmem>>, vector<2x16x128xf32>
    %39 = vector.shape_cast %38 : vector<2x16x128xf32> to vector<32x128xf32>
    %c0_41 = arith.constant 0 : index
    %c3_42 = arith.constant 3 : index
    %c0_43 = arith.constant 0 : index
    %40 = vector.load %arg6[%c0_41, %c3_42, %c0_43] : memref<2x20x128xf32, #tpu.memory_space<vmem>>, vector<2x16x128xf32>
    %41 = vector.shape_cast %40 : vector<2x16x128xf32> to vector<32x128xf32>
    %c0_44 = arith.constant 0 : index
    %c4_45 = arith.constant 4 : index
    %c0_46 = arith.constant 0 : index
    %42 = vector.load %arg6[%c0_44, %c4_45, %c0_46] : memref<2x20x128xf32, #tpu.memory_space<vmem>>, vector<2x16x128xf32>
    %43 = vector.shape_cast %42 : vector<2x16x128xf32> to vector<32x128xf32>
    %44 = tpu.concatenate %35, %37, %39, %41, %43 in 1 : vector<32x128xf32>, vector<32x128xf32>, vector<32x128xf32>, vector<32x128xf32>, vector<32x128xf32> -> vector<32x640xf32>
    %c1_47 = arith.constant 1 : index
    %c0_48 = arith.constant 0 : index
    %c0_49 = arith.constant 0 : index
    %45 = vector.load %arg2[%c1_47, %c0_48, %c0_49] : memref<3x640x128xf32, #tpu.memory_space<vmem>>, vector<1x640x128xf32>
    %46 = vector.shape_cast %45 : vector<1x640x128xf32> to vector<640x128xf32>
    %cst_50 = arith.constant dense<0.000000e+00> : vector<32x128xf32>
    %47 = tpu.matmul %44, %46, %cst_50 {dimension_numbers = #tpu.dot_dimension_numbers<[1], [0], [0], [1], [0, 0, 1, 1], [], []>} : vector<32x640xf32>, vector<640x128xf32>, vector<32x128xf32> -> vector<32x128xf32>
    %48 = vector.extract_strided_slice %5 {offsets = [1, 0], sizes = [1, 128], strides = [1, 1]} : vector<3x128xf32> to vector<1x128xf32>
    %49 = vector.shape_cast %48 : vector<1x128xf32> to vector<128xf32>
    %50 = vector.shape_cast %49 : vector<128xf32> to vector<1x128xf32>
    %51 = vector.broadcast %50 : vector<1x128xf32> to vector<32x128xf32>
    %52 = arith.mulf %47, %51 : vector<32x128xf32>
    %53 = vector.extract_strided_slice %6 {offsets = [1, 0], sizes = [1, 128], strides = [1, 1]} : vector<3x128xf32> to vector<1x128xf32>
    %54 = vector.shape_cast %53 : vector<1x128xf32> to vector<128xf32>
    %55 = vector.shape_cast %54 : vector<128xf32> to vector<1x128xf32>
    %56 = vector.broadcast %55 : vector<1x128xf32> to vector<32x128xf32>
    %57 = arith.addf %52, %56 : vector<32x128xf32>
    %58 = math.tanh %57 : vector<32x128xf32>
    %59 = vector.shape_cast %58 : vector<32x128xf32> to vector<2x16x128xf32>
    %c0_51 = arith.constant 0 : index
    %c2_52 = arith.constant 2 : index
    %c0_53 = arith.constant 0 : index
    %60 = vector.load %arg6[%c0_51, %c2_52, %c0_53] : memref<2x20x128xf32, #tpu.memory_space<vmem>>, vector<2x16x128xf32>
    tpu.vector_store %arg6[%c0_51, %c2_52, %c0_53], %59 {strides = array<i32>} : memref<2x20x128xf32, #tpu.memory_space<vmem>>, vector<2x16x128xf32>,
    %c0_54 = arith.constant 0 : index
    %c0_55 = arith.constant 0 : index
    %c0_56 = arith.constant 0 : index
    %61 = vector.load %arg6[%c0_54, %c0_55, %c0_56] : memref<2x20x128xf32, #tpu.memory_space<vmem>>, vector<2x16x128xf32>
    %62 = vector.shape_cast %61 : vector<2x16x128xf32> to vector<32x128xf32>
    %c0_57 = arith.constant 0 : index
    %c1_58 = arith.constant 1 : index
    %c0_59 = arith.constant 0 : index
    %63 = vector.load %arg6[%c0_57, %c1_58, %c0_59] : memref<2x20x128xf32, #tpu.memory_space<vmem>>, vector<2x16x128xf32>
    %64 = vector.shape_cast %63 : vector<2x16x128xf32> to vector<32x128xf32>
    %c0_60 = arith.constant 0 : index
    %c2_61 = arith.constant 2 : index
    %c0_62 = arith.constant 0 : index
    %65 = vector.load %arg6[%c0_60, %c2_61, %c0_62] : memref<2x20x128xf32, #tpu.memory_space<vmem>>, vector<2x16x128xf32>
    %66 = vector.shape_cast %65 : vector<2x16x128xf32> to vector<32x128xf32>
    %c0_63 = arith.constant 0 : index
    %c3_64 = arith.constant 3 : index
    %c0_65 = arith.constant 0 : index
    %67 = vector.load %arg6[%c0_63, %c3_64, %c0_65] : memref<2x20x128xf32, #tpu.memory_space<vmem>>, vector<2x16x128xf32>
    %68 = vector.shape_cast %67 : vector<2x16x128xf32> to vector<32x128xf32>
    %c0_66 = arith.constant 0 : index
    %c4_67 = arith.constant 4 : index
    %c0_68 = arith.constant 0 : index
    %69 = vector.load %arg6[%c0_66, %c4_67, %c0_68] : memref<2x20x128xf32, #tpu.memory_space<vmem>>, vector<2x16x128xf32>
    %70 = vector.shape_cast %69 : vector<2x16x128xf32> to vector<32x128xf32>
    %71 = tpu.concatenate %62, %64, %66, %68, %70 in 1 : vector<32x128xf32>, vector<32x128xf32>, vector<32x128xf32>, vector<32x128xf32>, vector<32x128xf32> -> vector<32x640xf32>
    %c2_69 = arith.constant 2 : index
    %c0_70 = arith.constant 0 : index
    %c0_71 = arith.constant 0 : index
    %72 = vector.load %arg2[%c2_69, %c0_70, %c0_71] : memref<3x640x128xf32, #tpu.memory_space<vmem>>, vector<1x640x128xf32>
    %73 = vector.shape_cast %72 : vector<1x640x128xf32> to vector<640x128xf32>
    %cst_72 = arith.constant dense<0.000000e+00> : vector<32x128xf32>
    %74 = tpu.matmul %71, %73, %cst_72 {dimension_numbers = #tpu.dot_dimension_numbers<[1], [0], [0], [1], [0, 0, 1, 1], [], []>} : vector<32x640xf32>, vector<640x128xf32>, vector<32x128xf32> -> vector<32x128xf32>
    %75 = vector.extract_strided_slice %5 {offsets = [2, 0], sizes = [1, 128], strides = [1, 1]} : vector<3x128xf32> to vector<1x128xf32>
    %76 = vector.shape_cast %75 : vector<1x128xf32> to vector<128xf32>
    %77 = vector.shape_cast %76 : vector<128xf32> to vector<1x128xf32>
    %78 = vector.broadcast %77 : vector<1x128xf32> to vector<32x128xf32>
    %79 = arith.mulf %74, %78 : vector<32x128xf32>
    %80 = vector.extract_strided_slice %6 {offsets = [2, 0], sizes = [1, 128], strides = [1, 1]} : vector<3x128xf32> to vector<1x128xf32>
    %81 = vector.shape_cast %80 : vector<1x128xf32> to vector<128xf32>
    %82 = vector.shape_cast %81 : vector<128xf32> to vector<1x128xf32>
    %83 = vector.broadcast %82 : vector<1x128xf32> to vector<32x128xf32>
    %84 = arith.addf %79, %83 : vector<32x128xf32>
    %85 = vector.shape_cast %84 : vector<32x128xf32> to vector<2x16x128xf32>
    %c0_73 = arith.constant 0 : index
    %c0_74 = arith.constant 0 : index
    %c0_75 = arith.constant 0 : index
    %86 = vector.load %arg5[%c0_73, %c0_74, %c0_75] : memref<2x16x128xf32, #tpu.memory_space<vmem>>, vector<2x16x128xf32>
    tpu.vector_store %arg5[%c0_73, %c0_74, %c0_75], %85 {strides = array<i32>} : memref<2x16x128xf32, #tpu.memory_space<vmem>>, vector<2x16x128xf32>,
    return
  }
  func.func @transform_0(%arg0: i32) -> (i32, i32, i32) {
    %c0_i32 = arith.constant 0 : i32
    %c0_i32_0 = arith.constant 0 : i32
    %c0_i32_1 = arith.constant 0 : i32
    %c0_i32_2 = arith.constant 0 : i32
    return %c0_i32, %c0_i32_0, %c0_i32_1 : i32, i32, i32
  }
  func.func @transform_1(%arg0: i32) -> (i32, i32, i32) {
    %c0_i32 = arith.constant 0 : i32
    %c0_i32_0 = arith.constant 0 : i32
    %c0_i32_1 = arith.constant 0 : i32
    %c0_i32_2 = arith.constant 0 : i32
    return %c0_i32, %c0_i32_0, %c0_i32_1 : i32, i32, i32
  }
  func.func @transform_2(%arg0: i32) -> (i32, i32) {
    %c0_i32 = arith.constant 0 : i32
    %c0_i32_0 = arith.constant 0 : i32
    %c0_i32_1 = arith.constant 0 : i32
    return %c0_i32, %c0_i32_0 : i32, i32
  }
  func.func @transform_3(%arg0: i32) -> (i32, i32) {
    %c0_i32 = arith.constant 0 : i32
    %c0_i32_0 = arith.constant 0 : i32
    %c0_i32_1 = arith.constant 0 : i32
    return %c0_i32, %c0_i32_0 : i32, i32
  }
  func.func @transform_4(%arg0: i32) -> (i32, i32, i32) {
    %c0_i32 = arith.constant 0 : i32
    %c0_i32_0 = arith.constant 0 : i32
    %c0_i32_1 = arith.constant 0 : i32
    %c0_i32_2 = arith.constant 0 : i32
    return %c0_i32, %c0_i32_0, %c0_i32_1 : i32, i32, i32
  }
}

</mosaic_0001>

<llo_original>
// kernel: sodium_pitch_predictor_forward.1
$region0: #{sodium_pitch_predictor_forward.1}
  #allocation0 [shape = 'u32[]', space=smem, size = 0x4, offset = 0x4, fixed_abs, tag = 'smem constant byte address 0x4 - core index']
  #allocation1 [shape = 'u32[144,128]{1,0:T(1,128)}', space=vmem, size = 0x12000, scoped, tag = 'internal scratch']
  #allocation2 [shape = 'f32[2,20,128]{2,1,0:T(8,128)}', space=vmem, size = 0x6000, scoped, tag = 'scratch operand']
  %s0 = inlined_call_operand.vmem [shape: f32[2,16,128], index: 0, kind: input, shape index: {}]
  %s1 = inlined_call_operand.hbm [shape: f32[3,640,128], index: 1, kind: input, shape index: {}]
  %s2 = inlined_call_operand.vmem [shape: f32[3,128], index: 2, kind: input, shape index: {}]
  %s3 = inlined_call_operand.vmem [shape: f32[3,128], index: 3, kind: input, shape index: {}]
  %s4 = inlined_call_operand.vmem [shape: f32[2,16,128], index: 4, kind: output, shape index: {}]
  %s5 = sld [smem:[#allocation0]]
  $region30: #{sodium_pitch_predictor_forward.1} parent=0
    _
  %s7 = ssub.s32 1, %s5
  %s8 = scalar_select 0, %s7, %s5
  $region1: #{sodium_pitch_predictor_forward.1} parent=0
    #allocation3 [shape = 'u8[983040]{0}', space=vmem, size = 0xf0000, scoped, tag = 'input window, operand 1, single buffered']
    #allocation4 [shape = 's32[1]{0}', space=sflag, size = 0x4, scoped, tag = 'scoped memory for sodium_pitch_predictor_forward.1']
    %9 = vsyncpa [#allocation4], 0
    // Predicated region
    $region2: #{sodium_pitch_predictor_forward.1} parent=1 // pred_check
      _
    $region3: #{sodium_pitch_predictor_forward.1} parent=1 // pred_check_branch
      %11 = sbr.rel (0) target = $region5
    $region4: #{sodium_pitch_predictor_forward.1} parent=1 // pred_region
      _
    $region5: #{sodium_pitch_predictor_forward.1} parent=1 // pred_fallthru
      _
    // Predicated region
    $region6: #{sodium_pitch_predictor_forward.1} parent=1 // pred_check
      _
    $region7: #{sodium_pitch_predictor_forward.1} parent=1 // pred_check_branch
      %13 = sbr.rel (0) target = $region9
    $region8: #{sodium_pitch_predictor_forward.1} parent=1 // pred_region
      %s15 = ssub.s32 30720, 30720
      %16 = vsyncadd [#allocation4], %s15
      %s17 = sshll.u32 [#allocation3], 4
      %s18 = int_to_ptr.vmem [resolvable:$true] %s17
      %23 = dma.hbm_to_vmem [thread:$0]  %s1, 30720, %s18, [#allocation4], 128, 128, 8
    $region9: #{sodium_pitch_predictor_forward.1} parent=1 // pred_fallthru
      _
    // Predicated region
    $region10: #{sodium_pitch_predictor_forward.1} parent=1 // pred_check
      _
    $region11: #{sodium_pitch_predictor_forward.1} parent=1 // pred_check_branch
      %25 = sbr.rel (0) target = $region13
    $region12: #{sodium_pitch_predictor_forward.1} parent=1 // pred_region
      _
    $region13: #{sodium_pitch_predictor_forward.1} parent=1 // pred_fallthru
      _
    // Predicated region
    $region14: #{sodium_pitch_predictor_forward.1} parent=1 // pred_check
      _
    $region15: #{sodium_pitch_predictor_forward.1} parent=1 // pred_check_branch
      %27 = sbr.rel (0) target = $region17
    $region16: #{sodium_pitch_predictor_forward.1} parent=1 // pred_region
      _
    $region17: #{sodium_pitch_predictor_forward.1} parent=1 // pred_fallthru
      _
    // Predicated region
    $region18: #{sodium_pitch_predictor_forward.1} parent=1 // pred_check
      _
    $region19: #{sodium_pitch_predictor_forward.1} parent=1 // pred_check_branch
      %29 = sbr.rel (0) target = $region21
    $region20: #{sodium_pitch_predictor_forward.1} parent=1 // pred_region
      %30 = dma.done [#allocation4], 30720
    $region21: #{sodium_pitch_predictor_forward.1} parent=1 // pred_fallthru
      _
    %31 = vst [vmem:[#allocation2] sm:$0x3] 0.0
    %32 = vst [vmem:[#allocation2 + $0x18] sm:$0x3] 0.0
    %33 = vst [vmem:[#allocation2 + $0x12] sm:$0x3] 0.0
    %34 = vst [vmem:[#allocation2 + $0x2a] sm:$0x3] 0.0
    %v35 = vld [vmem:[%s0] sm:$0xff]
    %v36 = vld [vmem:[%s0 + $0x8] sm:$0xff]
    %v37 = vld [vmem:[%s0 + $0x10] sm:$0xff]
    %v38 = vld [vmem:[%s0 + $0x18] sm:$0xff]
    %39 = vst [vmem:[#allocation2 + $0x2] sm:$0xff] %v35
    %40 = vst [vmem:[#allocation2 + $0xa] sm:$0xff] %v36
    %41 = vst [vmem:[#allocation2 + $0x1a] sm:$0xff] %v37
    %42 = vst [vmem:[#allocation2 + $0x22] sm:$0xff] %v38
    %v43 = vld [vmem:[%s2] sm:$0x7]
    %v44 = vld [vmem:[%s3] sm:$0x7]
    %v45 = vld [vmem:[#allocation2] sm:$0xff]
    %v46 = vld [vmem:[#allocation2 + $0x8] sm:$0xff]
    %v47 = vld [vmem:[#allocation2 + $0x18] sm:$0xff]
    %v48 = vld [vmem:[#allocation2 + $0x20] sm:$0xff]
    %v49 = vld [vmem:[#allocation2 + $0x1] sm:$0xff]
    %v50 = vld [vmem:[#allocation2 + $0x9] sm:$0xff]
    %v51 = vld [vmem:[#allocation2 + $0x19] sm:$0xff]
    %v52 = vld [vmem:[#allocation2 + $0x21] sm:$0xff]
    %v53 = vld [vmem:[#allocation2 + $0x2] sm:$0xff]
    %v54 = vld [vmem:[#allocation2 + $0xa] sm:$0xff]
    %v55 = vld [vmem:[#allocation2 + $0x1a] sm:$0xff]
    %v56 = vld [vmem:[#allocation2 + $0x22] sm:$0xff]
    %v57 = vld [vmem:[#allocation2 + $0x3] sm:$0xff]
    %v58 = vld [vmem:[#allocation2 + $0xb] sm:$0xff]
    %v59 = vld [vmem:[#allocation2 + $0x1b] sm:$0xff]
    %v60 = vld [vmem:[#allocation2 + $0x23] sm:$0xff]
    %v61 = vld [vmem:[#allocation2 + $0x4] sm:$0xff]
    %v62 = vld [vmem:[#allocation2 + $0xc] sm:$0xff]
    %v63 = vld [vmem:[#allocation2 + $0x1c] sm:$0xff]
    %v64 = vld [vmem:[#allocation2 + $0x24] sm:$0xff]
    %v65 = vld [vmem:[#allocation3] sm:$0xff]
    %v66 = vld [vmem:[#allocation3 + $0x8] sm:$0xff]
    %v67 = vld [vmem:[#allocation3 + $0x10] sm:$0xff]
    %v68 = vld [vmem:[#allocation3 + $0x18] sm:$0xff]
    %v69 = vld [vmem:[#allocation3 + $0x20] sm:$0xff]
    %v70 = vld [vmem:[#allocation3 + $0x28] sm:$0xff]
    %v71 = vld [vmem:[#allocation3 + $0x30] sm:$0xff]
    %v72 = vld [vmem:[#allocation3 + $0x38] sm:$0xff]
    %v73 = vld [vmem:[#allocation3 + $0x40] sm:$0xff]
    %v74 = vld [vmem:[#allocation3 + $0x48] sm:$0xff]
    %v75 = vld [vmem:[#allocation3 + $0x50] sm:$0xff]
    %v76 = vld [vmem:[#allocation3 + $0x58] sm:$0xff]
    %v77 = vld [vmem:[#allocation3 + $0x60] sm:$0xff]
    %v78 = vld [vmem:[#allocation3 + $0x68] sm:$0xff]
    %v79 = vld [vmem:[#allocation3 + $0x70] sm:$0xff]
    %v80 = vld [vmem:[#allocation3 + $0x78] sm:$0xff]
    %v81 = vld [vmem:[#allocation3 + $0x80] sm:$0xff]
    %v82 = vld [vmem:[#allocation3 + $0x88] sm:$0xff]
    %v83 = vld [vmem:[#allocation3 + $0x90] sm:$0xff]
    %v84 = vld [vmem:[#allocation3 + $0x98] sm:$0xff]
    %v85 = vld [vmem:[#allocation3 + $0xa0] sm:$0xff]
    %v86 = vld [vmem:[#allocation3 + $0xa8] sm:$0xff]
    %v87 = vld [vmem:[#allocation3 + $0xb0] sm:$0xff]
    %v88 = vld [vmem:[#allocation3 + $0xb8] sm:$0xff]
    %v89 = vld [vmem:[#allocation3 + $0xc0] sm:$0xff]
    %v90 = vld [vmem:[#allocation3 + $0xc8] sm:$0xff]
    %v91 = vld [vmem:[#allocation3 + $0xd0] sm:$0xff]
    %v92 = vld [vmem:[#allocation3 + $0xd8] sm:$0xff]
    %v93 = vld [vmem:[#allocation3 + $0xe0] sm:$0xff]
    %v94 = vld [vmem:[#allocation3 + $0xe8] sm:$0xff]
    %v95 = vld [vmem:[#allocation3 + $0xf0] sm:$0xff]
    %v96 = vld [vmem:[#allocation3 + $0xf8] sm:$0xff]
    %v97 = vld [vmem:[#allocation3 + $0x100] sm:$0xff]
    %v98 = vld [vmem:[#allocation3 + $0x108] sm:$0xff]
    %v99 = vld [vmem:[#allocation3 + $0x110] sm:$0xff]
    %v100 = vld [vmem:[#allocation3 + $0x118] sm:$0xff]
    %v101 = vld [vmem:[#allocation3 + $0x120] sm:$0xff]
    %v102 = vld [vmem:[#allocation3 + $0x128] sm:$0xff]
    %v103 = vld [vmem:[#allocation3 + $0x130] sm:$0xff]
    %v104 = vld [vmem:[#allocation3 + $0x138] sm:$0xff]
    %v105 = vld [vmem:[#allocation3 + $0x140] sm:$0xff]
    %v106 = vld [vmem:[#allocation3 + $0x148] sm:$0xff]
    %v107 = vld [vmem:[#allocation3 + $0x150] sm:$0xff]
    %v108 = vld [vmem:[#allocation3 + $0x158] sm:$0xff]
    %v109 = vld [vmem:[#allocation3 + $0x160] sm:$0xff]
    %v110 = vld [vmem:[#allocation3 + $0x168] sm:$0xff]
    %v111 = vld [vmem:[#allocation3 + $0x170] sm:$0xff]
    %v112 = vld [vmem:[#allocation3 + $0x178] sm:$0xff]
    %v113 = vld [vmem:[#allocation3 + $0x180] sm:$0xff]
    %v114 = vld [vmem:[#allocation3 + $0x188] sm:$0xff]
    %v115 = vld [vmem:[#allocation3 + $0x190] sm:$0xff]
    %v116 = vld [vmem:[#allocation3 + $0x198] sm:$0xff]
    %v117 = vld [vmem:[#allocation3 + $0x1a0] sm:$0xff]
    %v118 = vld [vmem:[#allocation3 + $0x1a8] sm:$0xff]
    %v119 = vld [vmem:[#allocation3 + $0x1b0] sm:$0xff]
    %v120 = vld [vmem:[#allocation3 + $0x1b8] sm:$0xff]
    %v121 = vld [vmem:[#allocation3 + $0x1c0] sm:$0xff]
    %v122 = vld [vmem:[#allocation3 + $0x1c8] sm:$0xff]
    %v123 = vld [vmem:[#allocation3 + $0x1d0] sm:$0xff]
    %v124 = vld [vmem:[#allocation3 + $0x1d8] sm:$0xff]
    %v125 = vld [vmem:[#allocation3 + $0x1e0] sm:$0xff]
    %v126 = vld [vmem:[#allocation3 + $0x1e8] sm:$0xff]
    %v127 = vld [vmem:[#allocation3 + $0x1f0] sm:$0xff]
    %v128 = vld [vmem:[#allocation3 + $0x1f8] sm:$0xff]
    %v129 = vld [vmem:[#allocation3 + $0x200] sm:$0xff]
    %v130 = vld [vmem:[#allocation3 + $0x208] sm:$0xff]
    %v131 = vld [vmem:[#allocation3 + $0x210] sm:$0xff]
    %v132 = vld [vmem:[#allocation3 + $0x218] sm:$0xff]
    %v133 = vld [vmem:[#allocation3 + $0x220] sm:$0xff]
    %v134 = vld [vmem:[#allocation3 + $0x228] sm:$0xff]
    %v135 = vld [vmem:[#allocation3 + $0x230] sm:$0xff]
    %v136 = vld [vmem:[#allocation3 + $0x238] sm:$0xff]
    %v137 = vld [vmem:[#allocation3 + $0x240] sm:$0xff]
    %v138 = vld [vmem:[#allocation3 + $0x248] sm:$0xff]
    %v139 = vld [vmem:[#allocation3 + $0x250] sm:$0xff]
    %v140 = vld [vmem:[#allocation3 + $0x258] sm:$0xff]
    %v141 = vld [vmem:[#allocation3 + $0x260] sm:$0xff]
    %v142 = vld [vmem:[#allocation3 + $0x268] sm:$0xff]
    %v143 = vld [vmem:[#allocation3 + $0x270] sm:$0xff]
    %v144 = vld [vmem:[#allocation3 + $0x278] sm:$0xff]
    %145 = vmatprep.subr.mxu0 0.0
    %146 = vmatpush1.msra.mxu0 %v80
    %147 = vmatprep.subr.mxu0 0.0
    %148 = vmatpush1.msra.mxu0 %v79
    %149 = vmatprep.subr.mxu0 0.0
    %150 = vmatpush1.msra.mxu0 %v78
    %151 = vmatprep.subr.mxu0 0.0
    %152 = vmatpush1.msra.mxu0 %v77
    %153 = vmatprep.subr.mxu0 0.0
    %154 = vmatpush1.msra.mxu0 %v76
    %155 = vmatprep.subr.mxu0 0.0
    %156 = vmatpush1.msra.mxu0 %v75
    %157 = vmatprep.subr.mxu0 0.0
    %158 = vmatpush1.msra.mxu0 %v74
    %159 = vmatprep.subr.mxu0 0.0
    %160 = vmatpush1.msra.mxu0 %v73
    %161 = vmatprep.subr.mxu0 0.0
    %162 = vmatpush1.msra.mxu0 %v72
    %163 = vmatprep.subr.mxu0 0.0
    %164 = vmatpush1.msra.mxu0 %v71
    %165 = vmatprep.subr.mxu0 0.0
    %166 = vmatpush1.msra.mxu0 %v70
    %167 = vmatprep.subr.mxu0 0.0
    %168 = vmatpush1.msra.mxu0 %v69
    %169 = vmatprep.subr.mxu0 0.0
    %170 = vmatpush1.msra.mxu0 %v68
    %171 = vmatprep.subr.mxu0 0.0
    %172 = vmatpush1.msra.mxu0 %v67
    %173 = vmatprep.subr.mxu0 0.0
    %174 = vmatpush1.msra.mxu0 %v66
    %175 = vmatprep.subr.mxu0 0.0
    %176 = vmatpush1.msra.mxu0 %v65
    %177 = vmatprep.subr.mxu0 0.0
    %178 = vmatpush2.msra.mxu0 %v96
    %179 = vmatprep.subr.mxu0 0.0
    %180 = vmatpush2.msra.mxu0 %v95
    %181 = vmatprep.subr.mxu0 0.0
    %182 = vmatpush2.msra.mxu0 %v94
    %183 = vmatprep.subr.mxu0 0.0
    %184 = vmatpush2.msra.mxu0 %v93
    %185 = vmatprep.subr.mxu0 0.0
    %186 = vmatpush2.msra.mxu0 %v92
    %187 = vmatprep.subr.mxu0 0.0
    %188 = vmatpush2.msra.mxu0 %v91
    %189 = vmatprep.subr.mxu0 0.0
    %190 = vmatpush2.msra.mxu0 %v90
    %191 = vmatprep.subr.mxu0 0.0
    %192 = vmatpush2.msra.mxu0 %v89
    %193 = vmatprep.subr.mxu0 0.0
    %194 = vmatpush2.msra.mxu0 %v88
    %195 = vmatprep.subr.mxu0 0.0
    %196 = vmatpush2.msra.mxu0 %v87
    %197 = vmatprep.subr.mxu0 0.0
    %198 = vmatpush2.msra.mxu0 %v86
    %199 = vmatprep.subr.mxu0 0.0
    %200 = vmatpush2.msra.mxu0 %v85
    %201 = vmatprep.subr.mxu0 0.0
    %202 = vmatpush2.msra.mxu0 %v84
    %203 = vmatprep.subr.mxu0 0.0
    %204 = vmatpush2.msra.mxu0 %v83
    %205 = vmatprep.subr.mxu0 0.0
    %206 = vmatpush2.msra.mxu0 %v82
    %207 = vmatprep.subr.mxu0 0.0
    %208 = vmatpush2.msra.mxu0 %v81
    %209 = vmatprep.mubr.f32.mxu0 %v49
    %210 = vmatmul.mubr.f32.gmra.mxu0 %v45
    %v211 = vpop.f32.mrf.mxu0
    %v212 = vadd.f32 0.0, %v211
    %v213 = vpop.f32.mrf.mxu0
    %214 = vmatprep.mubr.f32.mxu0 %v50
    %215 = vmatmul.mubr.f32.gmra.mxu0 %v46
    %v216 = vpop.f32.mrf.mxu0
    %v217 = vadd.f32 0.0, %v216
    %v218 = vpop.f32.mrf.mxu0
    %219 = vmatprep.mubr.f32.mxu0 %v51
    %220 = vmatmul.mubr.f32.gmra.mxu0 %v47
    %v221 = vpop.f32.mrf.mxu0
    %v222 = vadd.f32 0.0, %v221
    %v223 = vpop.f32.mrf.mxu0
    %224 = vmatprep.mubr.f32.mxu0 %v52
    %225 = vmatmul.mubr.f32.gmra.mxu0 %v48
    %v226 = vpop.f32.mrf.mxu0
    %v227 = vadd.f32 0.0, %v226
    %v228 = vpop.f32.mrf.mxu0
    %229 = vdwg.mxu0
    %230 = vmatprep.subr.mxu0 0.0
    %231 = vmatpush1.msra.mxu0 %v112
    %232 = vmatprep.subr.mxu0 0.0
    %233 = vmatpush1.msra.mxu0 %v111
    %234 = vmatprep.subr.mxu0 0.0
    %235 = vmatpush1.msra.mxu0 %v110
    %236 = vmatprep.subr.mxu0 0.0
    %237 = vmatpush1.msra.mxu0 %v109
    %238 = vmatprep.subr.mxu0 0.0
    %239 = vmatpush1.msra.mxu0 %v108
    %240 = vmatprep.subr.mxu0 0.0
    %241 = vmatpush1.msra.mxu0 %v107
    %242 = vmatprep.subr.mxu0 0.0
    %243 = vmatpush1.msra.mxu0 %v106
    %244 = vmatprep.subr.mxu0 0.0
    %245 = vmatpush1.msra.mxu0 %v105
    %246 = vmatprep.subr.mxu0 0.0
    %247 = vmatpush1.msra.mxu0 %v104
    %248 = vmatprep.subr.mxu0 0.0
    %249 = vmatpush1.msra.mxu0 %v103
    %250 = vmatprep.subr.mxu0 0.0
    %251 = vmatpush1.msra.mxu0 %v102
    %252 = vmatprep.subr.mxu0 0.0
    %253 = vmatpush1.msra.mxu0 %v101
    %254 = vmatprep.subr.mxu0 0.0
    %255 = vmatpush1.msra.mxu0 %v100
    %256 = vmatprep.subr.mxu0 0.0
    %257 = vmatpush1.msra.mxu0 %v99
    %258 = vmatprep.subr.mxu0 0.0
    %259 = vmatpush1.msra.mxu0 %v98
    %260 = vmatprep.subr.mxu0 0.0
    %261 = vmatpush1.msra.mxu0 %v97
    %262 = vmatprep.subr.mxu0 0.0
    %263 = vmatpush2.msra.mxu0 %v128
    %264 = vmatprep.subr.mxu0 0.0
    %265 = vmatpush2.msra.mxu0 %v127
    %266 = vmatprep.subr.mxu0 0.0
    %267 = vmatpush2.msra.mxu0 %v126
    %268 = vmatprep.subr.mxu0 0.0
    %269 = vmatpush2.msra.mxu0 %v125
    %270 = vmatprep.subr.mxu0 0.0
    %271 = vmatpush2.msra.mxu0 %v124
    %272 = vmatprep.subr.mxu0 0.0
    %273 = vmatpush2.msra.mxu0 %v123
    %274 = vmatprep.subr.mxu0 0.0
    %275 = vmatpush2.msra.mxu0 %v122
    %276 = vmatprep.subr.mxu0 0.0
    %277 = vmatpush2.msra.mxu0 %v121
    %278 = vmatprep.subr.mxu0 0.0
    %279 = vmatpush2.msra.mxu0 %v120
    %280 = vmatprep.subr.mxu0 0.0
    %281 = vmatpush2.msra.mxu0 %v119
    %282 = vmatprep.subr.mxu0 0.0
    %283 = vmatpush2.msra.mxu0 %v118
    %284 = vmatprep.subr.mxu0 0.0
    %285 = vmatpush2.msra.mxu0 %v117
    %286 = vmatprep.subr.mxu0 0.0
    %287 = vmatpush2.msra.mxu0 %v116
    %288 = vmatprep.subr.mxu0 0.0
    %289 = vmatpush2.msra.mxu0 %v115
    %290 = vmatprep.subr.mxu0 0.0
    %291 = vmatpush2.msra.mxu0 %v114
    %292 = vmatprep.subr.mxu0 0.0
    %293 = vmatpush2.msra.mxu0 %v113
    %294 = vmatprep.mubr.f32.mxu0 %v57
    %295 = vmatmul.mubr.f32.gmra.mxu0 %v53
    %v296 = vpop.f32.mrf.mxu0
    %v297 = vadd.f32 %v212, %v296
    %v298 = vpop.f32.mrf.mxu0
    %299 = vmatprep.mubr.f32.mxu0 %v58
    %300 = vmatmul.mubr.f32.gmra.mxu0 %v54
    %v301 = vpop.f32.mrf.mxu0
    %v302 = vadd.f32 %v217, %v301
    %v303 = vpop.f32.mrf.mxu0
    %304 = vmatprep.mubr.f32.mxu0 %v59
    %305 = vmatmul.mubr.f32.gmra.mxu0 %v55
    %v306 = vpop.f32.mrf.mxu0
    %v307 = vadd.f32 %v222, %v306
    %v308 = vpop.f32.mrf.mxu0
    %309 = vmatprep.mubr.f32.mxu0 %v60
    %310 = vmatmul.mubr.f32.gmra.mxu0 %v56
    %v311 = vpop.f32.mrf.mxu0
    %v312 = vadd.f32 %v227, %v311
    %v313 = vpop.f32.mrf.mxu0
    %314 = vdwg.mxu0
    %315 = vmatprep.subr.mxu0 0.0
    %316 = vmatpush1.msra.mxu0 %v144
    %317 = vmatprep.subr.mxu0 0.0
    %318 = vmatpush1.msra.mxu0 %v143
    %319 = vmatprep.subr.mxu0 0.0
    %320 = vmatpush1.msra.mxu0 %v142
    %321 = vmatprep.subr.mxu0 0.0
    %322 = vmatpush1.msra.mxu0 %v141
    %323 = vmatprep.subr.mxu0 0.0
    %324 = vmatpush1.msra.mxu0 %v140
    %325 = vmatprep.subr.mxu0 0.0
    %326 = vmatpush1.msra.mxu0 %v139
    %327 = vmatprep.subr.mxu0 0.0
    %328 = vmatpush1.msra.mxu0 %v138
    %329 = vmatprep.subr.mxu0 0.0
    %330 = vmatpush1.msra.mxu0 %v137
    %331 = vmatprep.subr.mxu0 0.0
    %332 = vmatpush1.msra.mxu0 %v136
    %333 = vmatprep.subr.mxu0 0.0
    %334 = vmatpush1.msra.mxu0 %v135
    %335 = vmatprep.subr.mxu0 0.0
    %336 = vmatpush1.msra.mxu0 %v134
    %337 = vmatprep.subr.mxu0 0.0
    %338 = vmatpush1.msra.mxu0 %v133
    %339 = vmatprep.subr.mxu0 0.0
    %340 = vmatpush1.msra.mxu0 %v132
    %341 = vmatprep.subr.mxu0 0.0
    %342 = vmatpush1.msra.mxu0 %v131
    %343 = vmatprep.subr.mxu0 0.0
    %344 = vmatpush1.msra.mxu0 %v130
    %345 = vmatprep.subr.mxu0 0.0
    %346 = vmatpush1.msra.mxu0 %v129
    %347 = vmatprep.subr.mxu0 0.0
    %348 = vmatpush2.msra.mxu0 0.0
    %349 = vmatprep.subr.mxu0 0.0
    %350 = vmatpush2.msra.mxu0 0.0
    %351 = vmatprep.subr.mxu0 0.0
    %352 = vmatpush2.msra.mxu0 0.0
    %353 = vmatprep.subr.mxu0 0.0
    %354 = vmatpush2.msra.mxu0 0.0
    %355 = vmatprep.subr.mxu0 0.0
    %356 = vmatpush2.msra.mxu0 0.0
    %357 = vmatprep.subr.mxu0 0.0
    %358 = vmatpush2.msra.mxu0 0.0
    %359 = vmatprep.subr.mxu0 0.0
    %360 = vmatpush2.msra.mxu0 0.0
    %361 = vmatprep.subr.mxu0 0.0
    %362 = vmatpush2.msra.mxu0 0.0
    %363 = vmatprep.subr.mxu0 0.0
    %364 = vmatpush2.msra.mxu0 0.0
    %365 = vmatprep.subr.mxu0 0.0
    %366 = vmatpush2.msra.mxu0 0.0
    %367 = vmatprep.subr.mxu0 0.0
    %368 = vmatpush2.msra.mxu0 0.0
    %369 = vmatprep.subr.mxu0 0.0
    %370 = vmatpush2.msra.mxu0 0.0
    %371 = vmatprep.subr.mxu0 0.0
    %372 = vmatpush2.msra.mxu0 0.0
    %373 = vmatprep.subr.mxu0 0.0
    %374 = vmatpush2.msra.mxu0 0.0
    %375 = vmatprep.subr.mxu0 0.0
    %376 = vmatpush2.msra.mxu0 0.0
    %377 = vmatprep.subr.mxu0 0.0
    %378 = vmatpush2.msra.mxu0 0.0
    %379 = vmatprep.mubr.f32.mxu0 0.0
    %380 = vmatmul.mubr.f32.gmra.mxu0 %v61
    %v381 = vpop.f32.mrf.mxu0
    %v382 = vadd.f32 %v297, %v381
    %v383 = vpop.f32.mrf.mxu0
    %384 = vmatprep.mubr.f32.mxu0 0.0
    %385 = vmatmul.mubr.f32.gmra.mxu0 %v62
    %v386 = vpop.f32.mrf.mxu0
    %v387 = vadd.f32 %v302, %v386
    %v388 = vpop.f32.mrf.mxu0
    %389 = vmatprep.mubr.f32.mxu0 0.0
    %390 = vmatmul.mubr.f32.gmra.mxu0 %v63
    %v391 = vpop.f32.mrf.mxu0
    %v392 = vadd.f32 %v307, %v391
    %v393 = vpop.f32.mrf.mxu0
    %394 = vmatprep.mubr.f32.mxu0 0.0
    %395 = vmatmul.mubr.f32.gmra.mxu0 %v64
    %v396 = vpop.f32.mrf.mxu0
    %v397 = vadd.f32 %v312, %v396
    %v398 = vpop.f32.mrf.mxu0
    %399 = vdwg.mxu0
    %v400 = vlaneseq
    %v401 = vshrl.u32 %v400, 7
    %v402 = vsub.s32 0, %v401
    %v403 = vrot.slane %v43, %v402
    %v404 = vmul.f32 %v382, %v403
    %v405 = vmul.f32 %v387, %v403
    %v406 = vmul.f32 %v392, %v403
    %v407 = vmul.f32 %v397, %v403
    %v408 = vlaneseq
    %v409 = vshrl.u32 %v408, 7
    %v410 = vsub.s32 0, %v409
    %v411 = vrot.slane %v44, %v410
    %v412 = vadd.f32 %v404, %v411
    %v413 = vadd.f32 %v405, %v411
    %v414 = vadd.f32 %v406, %v411
    %v415 = vadd.f32 %v407, %v411
    %v416 = vtanh.pop %v412
    %v417 = vtanh.pop %v413
    %v418 = vtanh.pop %v414
    %v419 = vtanh.pop %v415
    %420 = vst [vmem:[#allocation2 + $0x2] sm:$0xff] %v416
    %421 = vst [vmem:[#allocation2 + $0xa] sm:$0xff] %v417
    %422 = vst [vmem:[#allocation2 + $0x1a] sm:$0xff] %v418
    %423 = vst [vmem:[#allocation2 + $0x22] sm:$0xff] %v419
    %v424 = vld [vmem:[#allocation2] sm:$0xff]
    %v425 = vld [vmem:[#allocation2 + $0x8] sm:$0xff]
    %v426 = vld [vmem:[#allocation2 + $0x18] sm:$0xff]
    %v427 = vld [vmem:[#allocation2 + $0x20] sm:$0xff]
    %v428 = vld [vmem:[#allocation2 + $0x1] sm:$0xff]
    %v429 = vld [vmem:[#allocation2 + $0x9] sm:$0xff]
    %v430 = vld [vmem:[#allocation2 + $0x19] sm:$0xff]
    %v431 = vld [vmem:[#allocation2 + $0x21] sm:$0xff]
    %v432 = vld [vmem:[#allocation2 + $0x2] sm:$0xff]
    %v433 = vld [vmem:[#allocation2 + $0xa] sm:$0xff]
    %v434 = vld [vmem:[#allocation2 + $0x1a] sm:$0xff]
    %v435 = vld [vmem:[#allocation2 + $0x22] sm:$0xff]
    %v436 = vld [vmem:[#allocation2 + $0x3] sm:$0xff]
    %v437 = vld [vmem:[#allocation2 + $0xb] sm:$0xff]
    %v438 = vld [vmem:[#allocation2 + $0x1b] sm:$0xff]
    %v439 = vld [vmem:[#allocation2 + $0x23] sm:$0xff]
    %v440 = vld [vmem:[#allocation2 + $0x4] sm:$0xff]
    %v441 = vld [vmem:[#allocation2 + $0xc] sm:$0xff]
    %v442 = vld [vmem:[#allocation2 + $0x1c] sm:$0xff]
    %v443 = vld [vmem:[#allocation2 + $0x24] sm:$0xff]
    %s444 = scalar_lea.vmem [#allocation3], 640
    %v445 = vld [vmem:[%s444] sm:$0xff]
    %v446 = vld [vmem:[%s444 + $0x8] sm:$0xff]
    %v447 = vld [vmem:[%s444 + $0x10] sm:$0xff]
    %v448 = vld [vmem:[%s444 + $0x18] sm:$0xff]
    %v449 = vld [vmem:[%s444 + $0x20] sm:$0xff]
    %v450 = vld [vmem:[%s444 + $0x28] sm:$0xff]
    %v451 = vld [vmem:[%s444 + $0x30] sm:$0xff]
    %v452 = vld [vmem:[%s444 + $0x38] sm:$0xff]
    %v453 = vld [vmem:[%s444 + $0x40] sm:$0xff]
    %v454 = vld [vmem:[%s444 + $0x48] sm:$0xff]
    %v455 = vld [vmem:[%s444 + $0x50] sm:$0xff]
    %v456 = vld [vmem:[%s444 + $0x58] sm:$0xff]
    %v457 = vld [vmem:[%s444 + $0x60] sm:$0xff]
    %v458 = vld [vmem:[%s444 + $0x68] sm:$0xff]
    %v459 = vld [vmem:[%s444 + $0x70] sm:$0xff]
    %v460 = vld [vmem:[%s444 + $0x78] sm:$0xff]
    %v461 = vld [vmem:[%s444 + $0x80] sm:$0xff]
    %v462 = vld [vmem:[%s444 + $0x88] sm:$0xff]
    %v463 = vld [vmem:[%s444 + $0x90] sm:$0xff]
    %v464 = vld [vmem:[%s444 + $0x98] sm:$0xff]
    %v465 = vld [vmem:[%s444 + $0xa0] sm:$0xff]
    %v466 = vld [vmem:[%s444 + $0xa8] sm:$0xff]
    %v467 = vld [vmem:[%s444 + $0xb0] sm:$0xff]
    %v468 = vld [vmem:[%s444 + $0xb8] sm:$0xff]
    %v469 = vld [vmem:[%s444 + $0xc0] sm:$0xff]
    %v470 = vld [vmem:[%s444 + $0xc8] sm:$0xff]
    %v471 = vld [vmem:[%s444 + $0xd0] sm:$0xff]
    %v472 = vld [vmem:[%s444 + $0xd8] sm:$0xff]
    %v473 = vld [vmem:[%s444 + $0xe0] sm:$0xff]
    %v474 = vld [vmem:[%s444 + $0xe8] sm:$0xff]
    %v475 = vld [vmem:[%s444 + $0xf0] sm:$0xff]
    %v476 = vld [vmem:[%s444 + $0xf8] sm:$0xff]
    %v477 = vld [vmem:[%s444 + $0x100] sm:$0xff]
    %v478 = vld [vmem:[%s444 + $0x108] sm:$0xff]
    %v479 = vld [vmem:[%s444 + $0x110] sm:$0xff]
    %v480 = vld [vmem:[%s444 + $0x118] sm:$0xff]
    %v481 = vld [vmem:[%s444 + $0x120] sm:$0xff]
    %v482 = vld [vmem:[%s444 + $0x128] sm:$0xff]
    %v483 = vld [vmem:[%s444 + $0x130] sm:$0xff]
    %v484 = vld [vmem:[%s444 + $0x138] sm:$0xff]
    %v485 = vld [vmem:[%s444 + $0x140] sm:$0xff]
    %v486 = vld [vmem:[%s444 + $0x148] sm:$0xff]
    %v487 = vld [vmem:[%s444 + $0x150] sm:$0xff]
    %v488 = vld [vmem:[%s444 + $0x158] sm:$0xff]
    %v489 = vld [vmem:[%s444 + $0x160] sm:$0xff]
    %v490 = vld [vmem:[%s444 + $0x168] sm:$0xff]
    %v491 = vld [vmem:[%s444 + $0x170] sm:$0xff]
    %v492 = vld [vmem:[%s444 + $0x178] sm:$0xff]
    %v493 = vld [vmem:[%s444 + $0x180] sm:$0xff]
    %v494 = vld [vmem:[%s444 + $0x188] sm:$0xff]
    %v495 = vld [vmem:[%s444 + $0x190] sm:$0xff]
    %v496 = vld [vmem:[%s444 + $0x198] sm:$0xff]
    %v497 = vld [vmem:[%s444 + $0x1a0] sm:$0xff]
    %v498 = vld [vmem:[%s444 + $0x1a8] sm:$0xff]
    %v499 = vld [vmem:[%s444 + $0x1b0] sm:$0xff]
    %v500 = vld [vmem:[%s444 + $0x1b8] sm:$0xff]
    %v501 = vld [vmem:[%s444 + $0x1c0] sm:$0xff]
    %v502 = vld [vmem:[%s444 + $0x1c8] sm:$0xff]
    %v503 = vld [vmem:[%s444 + $0x1d0] sm:$0xff]
    %v504 = vld [vmem:[%s444 + $0x1d8] sm:$0xff]
    %v505 = vld [vmem:[%s444 + $0x1e0] sm:$0xff]
    %v506 = vld [vmem:[%s444 + $0x1e8] sm:$0xff]
    %v507 = vld [vmem:[%s444 + $0x1f0] sm:$0xff]
    %v508 = vld [vmem:[%s444 + $0x1f8] sm:$0xff]
    %v509 = vld [vmem:[%s444 + $0x200] sm:$0xff]
    %v510 = vld [vmem:[%s444 + $0x208] sm:$0xff]
    %v511 = vld [vmem:[%s444 + $0x210] sm:$0xff]
    %v512 = vld [vmem:[%s444 + $0x218] sm:$0xff]
    %v513 = vld [vmem:[%s444 + $0x220] sm:$0xff]
    %v514 = vld [vmem:[%s444 + $0x228] sm:$0xff]
    %v515 = vld [vmem:[%s444 + $0x230] sm:$0xff]
    %v516 = vld [vmem:[%s444 + $0x238] sm:$0xff]
    %v517 = vld [vmem:[%s444 + $0x240] sm:$0xff]
    %v518 = vld [vmem:[%s444 + $0x248] sm:$0xff]
    %v519 = vld [vmem:[%s444 + $0x250] sm:$0xff]
    %v520 = vld [vmem:[%s444 + $0x258] sm:$0xff]
    %v521 = vld [vmem:[%s444 + $0x260] sm:$0xff]
    %v522 = vld [vmem:[%s444 + $0x268] sm:$0xff]
    %v523 = vld [vmem:[%s444 + $0x270] sm:$0xff]
    %v524 = vld [vmem:[%s444 + $0x278] sm:$0xff]
    %525 = vmatprep.subr.mxu0 0.0
    %526 = vmatpush1.msra.mxu0 %v460
    %527 = vmatprep.subr.mxu0 0.0
    %528 = vmatpush1.msra.mxu0 %v459
    %529 = vmatprep.subr.mxu0 0.0
    %530 = vmatpush1.msra.mxu0 %v458
    %531 = vmatprep.subr.mxu0 0.0
    %532 = vmatpush1.msra.mxu0 %v457
    %533 = vmatprep.subr.mxu0 0.0
    %534 = vmatpush1.msra.mxu0 %v456
    %535 = vmatprep.subr.mxu0 0.0
    %536 = vmatpush1.msra.mxu0 %v455
    %537 = vmatprep.subr.mxu0 0.0
    %538 = vmatpush1.msra.mxu0 %v454
    %539 = vmatprep.subr.mxu0 0.0
    %540 = vmatpush1.msra.mxu0 %v453
    %541 = vmatprep.subr.mxu0 0.0
    %542 = vmatpush1.msra.mxu0 %v452
    %543 = vmatprep.subr.mxu0 0.0
    %544 = vmatpush1.msra.mxu0 %v451
    %545 = vmatprep.subr.mxu0 0.0
    %546 = vmatpush1.msra.mxu0 %v450
    %547 = vmatprep.subr.mxu0 0.0
    %548 = vmatpush1.msra.mxu0 %v449
    %549 = vmatprep.subr.mxu0 0.0
    %550 = vmatpush1.msra.mxu0 %v448
    %551 = vmatprep.subr.mxu0 0.0
    %552 = vmatpush1.msra.mxu0 %v447
    %553 = vmatprep.subr.mxu0 0.0
    %554 = vmatpush1.msra.mxu0 %v446
    %555 = vmatprep.subr.mxu0 0.0
    %556 = vmatpush1.msra.mxu0 %v445
    %557 = vmatprep.subr.mxu0 0.0
    %558 = vmatpush2.msra.mxu0 %v476
    %559 = vmatprep.subr.mxu0 0.0
    %560 = vmatpush2.msra.mxu0 %v475
    %561 = vmatprep.subr.mxu0 0.0
    %562 = vmatpush2.msra.mxu0 %v474
    %563 = vmatprep.subr.mxu0 0.0
    %564 = vmatpush2.msra.mxu0 %v473
    %565 = vmatprep.subr.mxu0 0.0
    %566 = vmatpush2.msra.mxu0 %v472
    %567 = vmatprep.subr.mxu0 0.0
    %568 = vmatpush2.msra.mxu0 %v471
    %569 = vmatprep.subr.mxu0 0.0
    %570 = vmatpush2.msra.mxu0 %v470
    %571 = vmatprep.subr.mxu0 0.0
    %572 = vmatpush2.msra.mxu0 %v469
    %573 = vmatprep.subr.mxu0 0.0
    %574 = vmatpush2.msra.mxu0 %v468
    %575 = vmatprep.subr.mxu0 0.0
    %576 = vmatpush2.msra.mxu0 %v467
    %577 = vmatprep.subr.mxu0 0.0
    %578 = vmatpush2.msra.mxu0 %v466
    %579 = vmatprep.subr.mxu0 0.0
    %580 = vmatpush2.msra.mxu0 %v465
    %581 = vmatprep.subr.mxu0 0.0
    %582 = vmatpush2.msra.mxu0 %v464
    %583 = vmatprep.subr.mxu0 0.0
    %584 = vmatpush2.msra.mxu0 %v463
    %585 = vmatprep.subr.mxu0 0.0
    %586 = vmatpush2.msra.mxu0 %v462
    %587 = vmatprep.subr.mxu0 0.0
    %588 = vmatpush2.msra.mxu0 %v461
    %589 = vmatprep.mubr.f32.mxu0 %v428
    %590 = vmatmul.mubr.f32.gmra.mxu0 %v424
    %v591 = vpop.f32.mrf.mxu0
    %v592 = vadd.f32 0.0, %v591
    %v593 = vpop.f32.mrf.mxu0
    %594 = vmatprep.mubr.f32.mxu0 %v429
    %595 = vmatmul.mubr.f32.gmra.mxu0 %v425
    %v596 = vpop.f32.mrf.mxu0
    %v597 = vadd.f32 0.0, %v596
    %v598 = vpop.f32.mrf.mxu0
    %599 = vmatprep.mubr.f32.mxu0 %v430
    %600 = vmatmul.mubr.f32.gmra.mxu0 %v426
    %v601 = vpop.f32.mrf.mxu0
    %v602 = vadd.f32 0.0, %v601
    %v603 = vpop.f32.mrf.mxu0
    %604 = vmatprep.mubr.f32.mxu0 %v431
    %605 = vmatmul.mubr.f32.gmra.mxu0 %v427
    %v606 = vpop.f32.mrf.mxu0
    %v607 = vadd.f32 0.0, %v606
    %v608 = vpop.f32.mrf.mxu0
    %609 = vdwg.mxu0
    %610 = vmatprep.subr.mxu0 0.0
    %611 = vmatpush1.msra.mxu0 %v492
    %612 = vmatprep.subr.mxu0 0.0
    %613 = vmatpush1.msra.mxu0 %v491
    %614 = vmatprep.subr.mxu0 0.0
    %615 = vmatpush1.msra.mxu0 %v490
    %616 = vmatprep.subr.mxu0 0.0
    %617 = vmatpush1.msra.mxu0 %v489
    %618 = vmatprep.subr.mxu0 0.0
    %619 = vmatpush1.msra.mxu0 %v488
    %620 = vmatprep.subr.mxu0 0.0
    %621 = vmatpush1.msra.mxu0 %v487
    %622 = vmatprep.subr.mxu0 0.0
    %623 = vmatpush1.msra.mxu0 %v486
    %624 = vmatprep.subr.mxu0 0.0
    %625 = vmatpush1.msra.mxu0 %v485
    %626 = vmatprep.subr.mxu0 0.0
    %627 = vmatpush1.msra.mxu0 %v484
    %628 = vmatprep.subr.mxu0 0.0
    %629 = vmatpush1.msra.mxu0 %v483
    %630 = vmatprep.subr.mxu0 0.0
    %631 = vmatpush1.msra.mxu0 %v482
    %632 = vmatprep.subr.mxu0 0.0
    %633 = vmatpush1.msra.mxu0 %v481
    %634 = vmatprep.subr.mxu0 0.0
    %635 = vmatpush1.msra.mxu0 %v480
    %636 = vmatprep.subr.mxu0 0.0
    %637 = vmatpush1.msra.mxu0 %v479
    %638 = vmatprep.subr.mxu0 0.0
    %639 = vmatpush1.msra.mxu0 %v478
    %640 = vmatprep.subr.mxu0 0.0
    %641 = vmatpush1.msra.mxu0 %v477
    %642 = vmatprep.subr.mxu0 0.0
    %643 = vmatpush2.msra.mxu0 %v508
    %644 = vmatprep.subr.mxu0 0.0
    %645 = vmatpush2.msra.mxu0 %v507
    %646 = vmatprep.subr.mxu0 0.0
    %647 = vmatpush2.msra.mxu0 %v506
    %648 = vmatprep.subr.mxu0 0.0
    %649 = vmatpush2.msra.mxu0 %v505
    %650 = vmatprep.subr.mxu0 0.0
    %651 = vmatpush2.msra.mxu0 %v504
    %652 = vmatprep.subr.mxu0 0.0
    %653 = vmatpush2.msra.mxu0 %v503
    %654 = vmatprep.subr.mxu0 0.0
    %655 = vmatpush2.msra.mxu0 %v502
    %656 = vmatprep.subr.mxu0 0.0
    %657 = vmatpush2.msra.mxu0 %v501
    %658 = vmatprep.subr.mxu0 0.0
    %659 = vmatpush2.msra.mxu0 %v500
    %660 = vmatprep.subr.mxu0 0.0
    %661 = vmatpush2.msra.mxu0 %v499
    %662 = vmatprep.subr.mxu0 0.0
    %663 = vmatpush2.msra.mxu0 %v498
    %664 = vmatprep.subr.mxu0 0.0
    %665 = vmatpush2.msra.mxu0 %v497
    %666 = vmatprep.subr.mxu0 0.0
    %667 = vmatpush2.msra.mxu0 %v496
    %668 = vmatprep.subr.mxu0 0.0
    %669 = vmatpush2.msra.mxu0 %v495
    %670 = vmatprep.subr.mxu0 0.0
    %671 = vmatpush2.msra.mxu0 %v494
    %672 = vmatprep.subr.mxu0 0.0
    %673 = vmatpush2.msra.mxu0 %v493
    %674 = vmatprep.mubr.f32.mxu0 %v436
    %675 = vmatmul.mubr.f32.gmra.mxu0 %v432
    %v676 = vpop.f32.mrf.mxu0
    %v677 = vadd.f32 %v592, %v676
    %v678 = vpop.f32.mrf.mxu0
    %679 = vmatprep.mubr.f32.mxu0 %v437
    %680 = vmatmul.mubr.f32.gmra.mxu0 %v433
    %v681 = vpop.f32.mrf.mxu0
    %v682 = vadd.f32 %v597, %v681
    %v683 = vpop.f32.mrf.mxu0
    %684 = vmatprep.mubr.f32.mxu0 %v438
    %685 = vmatmul.mubr.f32.gmra.mxu0 %v434
    %v686 = vpop.f32.mrf.mxu0
    %v687 = vadd.f32 %v602, %v686
    %v688 = vpop.f32.mrf.mxu0
    %689 = vmatprep.mubr.f32.mxu0 %v439
    %690 = vmatmul.mubr.f32.gmra.mxu0 %v435
    %v691 = vpop.f32.mrf.mxu0
    %v692 = vadd.f32 %v607, %v691
    %v693 = vpop.f32.mrf.mxu0
    %694 = vdwg.mxu0
    %695 = vmatprep.subr.mxu0 0.0
    %696 = vmatpush1.msra.mxu0 %v524
    %697 = vmatprep.subr.mxu0 0.0
    %698 = vmatpush1.msra.mxu0 %v523
    %699 = vmatprep.subr.mxu0 0.0
    %700 = vmatpush1.msra.mxu0 %v522
    %701 = vmatprep.subr.mxu0 0.0
    %702 = vmatpush1.msra.mxu0 %v521
    %703 = vmatprep.subr.mxu0 0.0
    %704 = vmatpush1.msra.mxu0 %v520
    %705 = vmatprep.subr.mxu0 0.0
    %706 = vmatpush1.msra.mxu0 %v519
    %707 = vmatprep.subr.mxu0 0.0
    %708 = vmatpush1.msra.mxu0 %v518
    %709 = vmatprep.subr.mxu0 0.0
    %710 = vmatpush1.msra.mxu0 %v517
    %711 = vmatprep.subr.mxu0 0.0
    %712 = vmatpush1.msra.mxu0 %v516
    %713 = vmatprep.subr.mxu0 0.0
    %714 = vmatpush1.msra.mxu0 %v515
    %715 = vmatprep.subr.mxu0 0.0
    %716 = vmatpush1.msra.mxu0 %v514
    %717 = vmatprep.subr.mxu0 0.0
    %718 = vmatpush1.msra.mxu0 %v513
    %719 = vmatprep.subr.mxu0 0.0
    %720 = vmatpush1.msra.mxu0 %v512
    %721 = vmatprep.subr.mxu0 0.0
    %722 = vmatpush1.msra.mxu0 %v511
    %723 = vmatprep.subr.mxu0 0.0
    %724 = vmatpush1.msra.mxu0 %v510
    %725 = vmatprep.subr.mxu0 0.0
    %726 = vmatpush1.msra.mxu0 %v509
    %727 = vmatprep.subr.mxu0 0.0
    %728 = vmatpush2.msra.mxu0 0.0
    %729 = vmatprep.subr.mxu0 0.0
    %730 = vmatpush2.msra.mxu0 0.0
    %731 = vmatprep.subr.mxu0 0.0
    %732 = vmatpush2.msra.mxu0 0.0
    %733 = vmatprep.subr.mxu0 0.0
    %734 = vmatpush2.msra.mxu0 0.0
    %735 = vmatprep.subr.mxu0 0.0
    %736 = vmatpush2.msra.mxu0 0.0
    %737 = vmatprep.subr.mxu0 0.0
    %738 = vmatpush2.msra.mxu0 0.0
    %739 = vmatprep.subr.mxu0 0.0
    %740 = vmatpush2.msra.mxu0 0.0
    %741 = vmatprep.subr.mxu0 0.0
    %742 = vmatpush2.msra.mxu0 0.0
    %743 = vmatprep.subr.mxu0 0.0
    %744 = vmatpush2.msra.mxu0 0.0
    %745 = vmatprep.subr.mxu0 0.0
    %746 = vmatpush2.msra.mxu0 0.0
    %747 = vmatprep.subr.mxu0 0.0
    %748 = vmatpush2.msra.mxu0 0.0
    %749 = vmatprep.subr.mxu0 0.0
    %750 = vmatpush2.msra.mxu0 0.0
    %751 = vmatprep.subr.mxu0 0.0
    %752 = vmatpush2.msra.mxu0 0.0
    %753 = vmatprep.subr.mxu0 0.0
    %754 = vmatpush2.msra.mxu0 0.0
    %755 = vmatprep.subr.mxu0 0.0
    %756 = vmatpush2.msra.mxu0 0.0
    %757 = vmatprep.subr.mxu0 0.0
    %758 = vmatpush2.msra.mxu0 0.0
    %759 = vmatprep.mubr.f32.mxu0 0.0
    %760 = vmatmul.mubr.f32.gmra.mxu0 %v440
    %v761 = vpop.f32.mrf.mxu0
    %v762 = vadd.f32 %v677, %v761
    %v763 = vpop.f32.mrf.mxu0
    %764 = vmatprep.mubr.f32.mxu0 0.0
    %765 = vmatmul.mubr.f32.gmra.mxu0 %v441
    %v766 = vpop.f32.mrf.mxu0
    %v767 = vadd.f32 %v682, %v766
    %v768 = vpop.f32.mrf.mxu0
    %769 = vmatprep.mubr.f32.mxu0 0.0
    %770 = vmatmul.mubr.f32.gmra.mxu0 %v442
    %v771 = vpop.f32.mrf.mxu0
    %v772 = vadd.f32 %v687, %v771
    %v773 = vpop.f32.mrf.mxu0
    %774 = vmatprep.mubr.f32.mxu0 0.0
    %775 = vmatmul.mubr.f32.gmra.mxu0 %v443
    %v776 = vpop.f32.mrf.mxu0
    %v777 = vadd.f32 %v692, %v776
    %v778 = vpop.f32.mrf.mxu0
    %779 = vdwg.mxu0
    %v780 = vlaneseq
    %v781 = vshrl.u32 %v780, 7
    %v782 = vsub.s32 1, %v781
    %v783 = vrot.slane %v43, %v782
    %v784 = vmul.f32 %v762, %v783
    %v785 = vmul.f32 %v767, %v783
    %v786 = vmul.f32 %v772, %v783
    %v787 = vmul.f32 %v777, %v783
    %v788 = vlaneseq
    %v789 = vshrl.u32 %v788, 7
    %v790 = vsub.s32 1, %v789
    %v791 = vrot.slane %v44, %v790
    %v792 = vadd.f32 %v784, %v791
    %v793 = vadd.f32 %v785, %v791
    %v794 = vadd.f32 %v786, %v791
    %v795 = vadd.f32 %v787, %v791
    %v796 = vtanh.pop %v792
    %v797 = vtanh.pop %v793
    %v798 = vtanh.pop %v794
    %v799 = vtanh.pop %v795
    %800 = vst [vmem:[#allocation2 + $0x2] sm:$0xff] %v796
    %801 = vst [vmem:[#allocation2 + $0xa] sm:$0xff] %v797
    %802 = vst [vmem:[#allocation2 + $0x1a] sm:$0xff] %v798
    %803 = vst [vmem:[#allocation2 + $0x22] sm:$0xff] %v799
    %v804 = vld [vmem:[#allocation2] sm:$0xff]
    %v805 = vld [vmem:[#allocation2 + $0x8] sm:$0xff]
    %v806 = vld [vmem:[#allocation2 + $0x18] sm:$0xff]
    %v807 = vld [vmem:[#allocation2 + $0x20] sm:$0xff]
    %v808 = vld [vmem:[#allocation2 + $0x1] sm:$0xff]
    %v809 = vld [vmem:[#allocation2 + $0x9] sm:$0xff]
    %v810 = vld [vmem:[#allocation2 + $0x19] sm:$0xff]
    %v811 = vld [vmem:[#allocation2 + $0x21] sm:$0xff]
    %v812 = vld [vmem:[#allocation2 + $0x2] sm:$0xff]
    %v813 = vld [vmem:[#allocation2 + $0xa] sm:$0xff]
    %v814 = vld [vmem:[#allocation2 + $0x1a] sm:$0xff]
    %v815 = vld [vmem:[#allocation2 + $0x22] sm:$0xff]
    %v816 = vld [vmem:[#allocation2 + $0x3] sm:$0xff]
    %v817 = vld [vmem:[#allocation2 + $0xb] sm:$0xff]
    %v818 = vld [vmem:[#allocation2 + $0x1b] sm:$0xff]
    %v819 = vld [vmem:[#allocation2 + $0x23] sm:$0xff]
    %v820 = vld [vmem:[#allocation2 + $0x4] sm:$0xff]
    %v821 = vld [vmem:[#allocation2 + $0xc] sm:$0xff]
    %v822 = vld [vmem:[#allocation2 + $0x1c] sm:$0xff]
    %v823 = vld [vmem:[#allocation2 + $0x24] sm:$0xff]
    %s824 = scalar_lea.vmem [#allocation3], 1280
    %v825 = vld [vmem:[%s824] sm:$0xff]
    %v826 = vld [vmem:[%s824 + $0x8] sm:$0xff]
    %v827 = vld [vmem:[%s824 + $0x10] sm:$0xff]
    %v828 = vld [vmem:[%s824 + $0x18] sm:$0xff]
    %v829 = vld [vmem:[%s824 + $0x20] sm:$0xff]
    %v830 = vld [vmem:[%s824 + $0x28] sm:$0xff]
    %v831 = vld [vmem:[%s824 + $0x30] sm:$0xff]
    %v832 = vld [vmem:[%s824 + $0x38] sm:$0xff]
    %v833 = vld [vmem:[%s824 + $0x40] sm:$0xff]
    %v834 = vld [vmem:[%s824 + $0x48] sm:$0xff]
    %v835 = vld [vmem:[%s824 + $0x50] sm:$0xff]
    %v836 = vld [vmem:[%s824 + $0x58] sm:$0xff]
    %v837 = vld [vmem:[%s824 + $0x60] sm:$0xff]
    %v838 = vld [vmem:[%s824 + $0x68] sm:$0xff]
    %v839 = vld [vmem:[%s824 + $0x70] sm:$0xff]
    %v840 = vld [vmem:[%s824 + $0x78] sm:$0xff]
    %v841 = vld [vmem:[%s824 + $0x80] sm:$0xff]
    %v842 = vld [vmem:[%s824 + $0x88] sm:$0xff]
    %v843 = vld [vmem:[%s824 + $0x90] sm:$0xff]
    %v844 = vld [vmem:[%s824 + $0x98] sm:$0xff]
    %v845 = vld [vmem:[%s824 + $0xa0] sm:$0xff]
    %v846 = vld [vmem:[%s824 + $0xa8] sm:$0xff]
    %v847 = vld [vmem:[%s824 + $0xb0] sm:$0xff]
    %v848 = vld [vmem:[%s824 + $0xb8] sm:$0xff]
    %v849 = vld [vmem:[%s824 + $0xc0] sm:$0xff]
    %v850 = vld [vmem:[%s824 + $0xc8] sm:$0xff]
    %v851 = vld [vmem:[%s824 + $0xd0] sm:$0xff]
    %v852 = vld [vmem:[%s824 + $0xd8] sm:$0xff]
    %v853 = vld [vmem:[%s824 + $0xe0] sm:$0xff]
    %v854 = vld [vmem:[%s824 + $0xe8] sm:$0xff]
    %v855 = vld [vmem:[%s824 + $0xf0] sm:$0xff]
    %v856 = vld [vmem:[%s824 + $0xf8] sm:$0xff]
    %v857 = vld [vmem:[%s824 + $0x100] sm:$0xff]
    %v858 = vld [vmem:[%s824 + $0x108] sm:$0xff]
    %v859 = vld [vmem:[%s824 + $0x110] sm:$0xff]
    %v860 = vld [vmem:[%s824 + $0x118] sm:$0xff]
    %v861 = vld [vmem:[%s824 + $0x120] sm:$0xff]
    %v862 = vld [vmem:[%s824 + $0x128] sm:$0xff]
    %v863 = vld [vmem:[%s824 + $0x130] sm:$0xff]
    %v864 = vld [vmem:[%s824 + $0x138] sm:$0xff]
    %v865 = vld [vmem:[%s824 + $0x140] sm:$0xff]
    %v866 = vld [vmem:[%s824 + $0x148] sm:$0xff]
    %v867 = vld [vmem:[%s824 + $0x150] sm:$0xff]
    %v868 = vld [vmem:[%s824 + $0x158] sm:$0xff]
    %v869 = vld [vmem:[%s824 + $0x160] sm:$0xff]
    %v870 = vld [vmem:[%s824 + $0x168] sm:$0xff]
    %v871 = vld [vmem:[%s824 + $0x170] sm:$0xff]
    %v872 = vld [vmem:[%s824 + $0x178] sm:$0xff]
    %v873 = vld [vmem:[%s824 + $0x180] sm:$0xff]
    %v874 = vld [vmem:[%s824 + $0x188] sm:$0xff]
    %v875 = vld [vmem:[%s824 + $0x190] sm:$0xff]
    %v876 = vld [vmem:[%s824 + $0x198] sm:$0xff]
    %v877 = vld [vmem:[%s824 + $0x1a0] sm:$0xff]
    %v878 = vld [vmem:[%s824 + $0x1a8] sm:$0xff]
    %v879 = vld [vmem:[%s824 + $0x1b0] sm:$0xff]
    %v880 = vld [vmem:[%s824 + $0x1b8] sm:$0xff]
    %v881 = vld [vmem:[%s824 + $0x1c0] sm:$0xff]
    %v882 = vld [vmem:[%s824 + $0x1c8] sm:$0xff]
    %v883 = vld [vmem:[%s824 + $0x1d0] sm:$0xff]
    %v884 = vld [vmem:[%s824 + $0x1d8] sm:$0xff]
    %v885 = vld [vmem:[%s824 + $0x1e0] sm:$0xff]
    %v886 = vld [vmem:[%s824 + $0x1e8] sm:$0xff]
    %v887 = vld [vmem:[%s824 + $0x1f0] sm:$0xff]
    %v888 = vld [vmem:[%s824 + $0x1f8] sm:$0xff]
    %v889 = vld [vmem:[%s824 + $0x200] sm:$0xff]
    %v890 = vld [vmem:[%s824 + $0x208] sm:$0xff]
    %v891 = vld [vmem:[%s824 + $0x210] sm:$0xff]
    %v892 = vld [vmem:[%s824 + $0x218] sm:$0xff]
    %v893 = vld [vmem:[%s824 + $0x220] sm:$0xff]
    %v894 = vld [vmem:[%s824 + $0x228] sm:$0xff]
    %v895 = vld [vmem:[%s824 + $0x230] sm:$0xff]
    %v896 = vld [vmem:[%s824 + $0x238] sm:$0xff]
    %v897 = vld [vmem:[%s824 + $0x240] sm:$0xff]
    %v898 = vld [vmem:[%s824 + $0x248] sm:$0xff]
    %v899 = vld [vmem:[%s824 + $0x250] sm:$0xff]
    %v900 = vld [vmem:[%s824 + $0x258] sm:$0xff]
    %v901 = vld [vmem:[%s824 + $0x260] sm:$0xff]
    %v902 = vld [vmem:[%s824 + $0x268] sm:$0xff]
    %v903 = vld [vmem:[%s824 + $0x270] sm:$0xff]
    %v904 = vld [vmem:[%s824 + $0x278] sm:$0xff]
    %905 = vmatprep.subr.mxu0 0.0
    %906 = vmatpush1.msra.mxu0 %v840
    %907 = vmatprep.subr.mxu0 0.0
    %908 = vmatpush1.msra.mxu0 %v839
    %909 = vmatprep.subr.mxu0 0.0
    %910 = vmatpush1.msra.mxu0 %v838
    %911 = vmatprep.subr.mxu0 0.0
    %912 = vmatpush1.msra.mxu0 %v837
    %913 = vmatprep.subr.mxu0 0.0
    %914 = vmatpush1.msra.mxu0 %v836
    %915 = vmatprep.subr.mxu0 0.0
    %916 = vmatpush1.msra.mxu0 %v835
    %917 = vmatprep.subr.mxu0 0.0
    %918 = vmatpush1.msra.mxu0 %v834
    %919 = vmatprep.subr.mxu0 0.0
    %920 = vmatpush1.msra.mxu0 %v833
    %921 = vmatprep.subr.mxu0 0.0
    %922 = vmatpush1.msra.mxu0 %v832
    %923 = vmatprep.subr.mxu0 0.0
    %924 = vmatpush1.msra.mxu0 %v831
    %925 = vmatprep.subr.mxu0 0.0
    %926 = vmatpush1.msra.mxu0 %v830
    %927 = vmatprep.subr.mxu0 0.0
    %928 = vmatpush1.msra.mxu0 %v829
    %929 = vmatprep.subr.mxu0 0.0
    %930 = vmatpush1.msra.mxu0 %v828
    %931 = vmatprep.subr.mxu0 0.0
    %932 = vmatpush1.msra.mxu0 %v827
    %933 = vmatprep.subr.mxu0 0.0
    %934 = vmatpush1.msra.mxu0 %v826
    %935 = vmatprep.subr.mxu0 0.0
    %936 = vmatpush1.msra.mxu0 %v825
    %937 = vmatprep.subr.mxu0 0.0
    %938 = vmatpush2.msra.mxu0 %v856
    %939 = vmatprep.subr.mxu0 0.0
    %940 = vmatpush2.msra.mxu0 %v855
    %941 = vmatprep.subr.mxu0 0.0
    %942 = vmatpush2.msra.mxu0 %v854
    %943 = vmatprep.subr.mxu0 0.0
    %944 = vmatpush2.msra.mxu0 %v853
    %945 = vmatprep.subr.mxu0 0.0
    %946 = vmatpush2.msra.mxu0 %v852
    %947 = vmatprep.subr.mxu0 0.0
    %948 = vmatpush2.msra.mxu0 %v851
    %949 = vmatprep.subr.mxu0 0.0
    %950 = vmatpush2.msra.mxu0 %v850
    %951 = vmatprep.subr.mxu0 0.0
    %952 = vmatpush2.msra.mxu0 %v849
    %953 = vmatprep.subr.mxu0 0.0
    %954 = vmatpush2.msra.mxu0 %v848
    %955 = vmatprep.subr.mxu0 0.0
    %956 = vmatpush2.msra.mxu0 %v847
    %957 = vmatprep.subr.mxu0 0.0
    %958 = vmatpush2.msra.mxu0 %v846
    %959 = vmatprep.subr.mxu0 0.0
    %960 = vmatpush2.msra.mxu0 %v845
    %961 = vmatprep.subr.mxu0 0.0
    %962 = vmatpush2.msra.mxu0 %v844
    %963 = vmatprep.subr.mxu0 0.0
    %964 = vmatpush2.msra.mxu0 %v843
    %965 = vmatprep.subr.mxu0 0.0
    %966 = vmatpush2.msra.mxu0 %v842
    %967 = vmatprep.subr.mxu0 0.0
    %968 = vmatpush2.msra.mxu0 %v841
    %969 = vmatprep.mubr.f32.mxu0 %v808
    %970 = vmatmul.mubr.f32.gmra.mxu0 %v804
    %v971 = vpop.f32.mrf.mxu0
    %v972 = vadd.f32 0.0, %v971
    %v973 = vpop.f32.mrf.mxu0
    %974 = vmatprep.mubr.f32.mxu0 %v809
    %975 = vmatmul.mubr.f32.gmra.mxu0 %v805
    %v976 = vpop.f32.mrf.mxu0
    %v977 = vadd.f32 0.0, %v976
    %v978 = vpop.f32.mrf.mxu0
    %979 = vmatprep.mubr.f32.mxu0 %v810
    %980 = vmatmul.mubr.f32.gmra.mxu0 %v806
    %v981 = vpop.f32.mrf.mxu0
    %v982 = vadd.f32 0.0, %v981
    %v983 = vpop.f32.mrf.mxu0
    %984 = vmatprep.mubr.f32.mxu0 %v811
    %985 = vmatmul.mubr.f32.gmra.mxu0 %v807
    %v986 = vpop.f32.mrf.mxu0
    %v987 = vadd.f32 0.0, %v986
    %v988 = vpop.f32.mrf.mxu0
    %989 = vdwg.mxu0
    %990 = vmatprep.subr.mxu0 0.0
    %991 = vmatpush1.msra.mxu0 %v872
    %992 = vmatprep.subr.mxu0 0.0
    %993 = vmatpush1.msra.mxu0 %v871
    %994 = vmatprep.subr.mxu0 0.0
    %995 = vmatpush1.msra.mxu0 %v870
    %996 = vmatprep.subr.mxu0 0.0
    %997 = vmatpush1.msra.mxu0 %v869
    %998 = vmatprep.subr.mxu0 0.0
    %999 = vmatpush1.msra.mxu0 %v868
    %1000 = vmatprep.subr.mxu0 0.0
    %1001 = vmatpush1.msra.mxu0 %v867
    %1002 = vmatprep.subr.mxu0 0.0
    %1003 = vmatpush1.msra.mxu0 %v866
    %1004 = vmatprep.subr.mxu0 0.0
    %1005 = vmatpush1.msra.mxu0 %v865
    %1006 = vmatprep.subr.mxu0 0.0
    %1007 = vmatpush1.msra.mxu0 %v864
    %1008 = vmatprep.subr.mxu0 0.0
    %1009 = vmatpush1.msra.mxu0 %v863
    %1010 = vmatprep.subr.mxu0 0.0
    %1011 = vmatpush1.msra.mxu0 %v862
    %1012 = vmatprep.subr.mxu0 0.0
    %1013 = vmatpush1.msra.mxu0 %v861
    %1014 = vmatprep.subr.mxu0 0.0
    %1015 = vmatpush1.msra.mxu0 %v860
    %1016 = vmatprep.subr.mxu0 0.0
    %1017 = vmatpush1.msra.mxu0 %v859
    %1018 = vmatprep.subr.mxu0 0.0
    %1019 = vmatpush1.msra.mxu0 %v858
    %1020 = vmatprep.subr.mxu0 0.0
    %1021 = vmatpush1.msra.mxu0 %v857
    %1022 = vmatprep.subr.mxu0 0.0
    %1023 = vmatpush2.msra.mxu0 %v888
    %1024 = vmatprep.subr.mxu0 0.0
    %1025 = vmatpush2.msra.mxu0 %v887
    %1026 = vmatprep.subr.mxu0 0.0
    %1027 = vmatpush2.msra.mxu0 %v886
    %1028 = vmatprep.subr.mxu0 0.0
    %1029 = vmatpush2.msra.mxu0 %v885
    %1030 = vmatprep.subr.mxu0 0.0
    %1031 = vmatpush2.msra.mxu0 %v884
    %1032 = vmatprep.subr.mxu0 0.0
    %1033 = vmatpush2.msra.mxu0 %v883
    %1034 = vmatprep.subr.mxu0 0.0
    %1035 = vmatpush2.msra.mxu0 %v882
    %1036 = vmatprep.subr.mxu0 0.0
    %1037 = vmatpush2.msra.mxu0 %v881
    %1038 = vmatprep.subr.mxu0 0.0
    %1039 = vmatpush2.msra.mxu0 %v880
    %1040 = vmatprep.subr.mxu0 0.0
    %1041 = vmatpush2.msra.mxu0 %v879
    %1042 = vmatprep.subr.mxu0 0.0
    %1043 = vmatpush2.msra.mxu0 %v878
    %1044 = vmatprep.subr.mxu0 0.0
    %1045 = vmatpush2.msra.mxu0 %v877
    %1046 = vmatprep.subr.mxu0 0.0
    %1047 = vmatpush2.msra.mxu0 %v876
    %1048 = vmatprep.subr.mxu0 0.0
    %1049 = vmatpush2.msra.mxu0 %v875
    %1050 = vmatprep.subr.mxu0 0.0
    %1051 = vmatpush2.msra.mxu0 %v874
    %1052 = vmatprep.subr.mxu0 0.0
    %1053 = vmatpush2.msra.mxu0 %v873
    %1054 = vmatprep.mubr.f32.mxu0 %v816
    %1055 = vmatmul.mubr.f32.gmra.mxu0 %v812
    %v1056 = vpop.f32.mrf.mxu0
    %v1057 = vadd.f32 %v972, %v1056
    %v1058 = vpop.f32.mrf.mxu0
    %1059 = vmatprep.mubr.f32.mxu0 %v817
    %1060 = vmatmul.mubr.f32.gmra.mxu0 %v813
    %v1061 = vpop.f32.mrf.mxu0
    %v1062 = vadd.f32 %v977, %v1061
    %v1063 = vpop.f32.mrf.mxu0
    %1064 = vmatprep.mubr.f32.mxu0 %v818
    %1065 = vmatmul.mubr.f32.gmra.mxu0 %v814
    %v1066 = vpop.f32.mrf.mxu0
    %v1067 = vadd.f32 %v982, %v1066
    %v1068 = vpop.f32.mrf.mxu0
    %1069 = vmatprep.mubr.f32.mxu0 %v819
    %1070 = vmatmul.mubr.f32.gmra.mxu0 %v815
    %v1071 = vpop.f32.mrf.mxu0
    %v1072 = vadd.f32 %v987, %v1071
    %v1073 = vpop.f32.mrf.mxu0
    %1074 = vdwg.mxu0
    %1075 = vmatprep.subr.mxu0 0.0
    %1076 = vmatpush1.msra.mxu0 %v904
    %1077 = vmatprep.subr.mxu0 0.0
    %1078 = vmatpush1.msra.mxu0 %v903
    %1079 = vmatprep.subr.mxu0 0.0
    %1080 = vmatpush1.msra.mxu0 %v902
    %1081 = vmatprep.subr.mxu0 0.0
    %1082 = vmatpush1.msra.mxu0 %v901
    %1083 = vmatprep.subr.mxu0 0.0
    %1084 = vmatpush1.msra.mxu0 %v900
    %1085 = vmatprep.subr.mxu0 0.0
    %1086 = vmatpush1.msra.mxu0 %v899
    %1087 = vmatprep.subr.mxu0 0.0
    %1088 = vmatpush1.msra.mxu0 %v898
    %1089 = vmatprep.subr.mxu0 0.0
    %1090 = vmatpush1.msra.mxu0 %v897
    %1091 = vmatprep.subr.mxu0 0.0
    %1092 = vmatpush1.msra.mxu0 %v896
    %1093 = vmatprep.subr.mxu0 0.0
    %1094 = vmatpush1.msra.mxu0 %v895
    %1095 = vmatprep.subr.mxu0 0.0
    %1096 = vmatpush1.msra.mxu0 %v894
    %1097 = vmatprep.subr.mxu0 0.0
    %1098 = vmatpush1.msra.mxu0 %v893
    %1099 = vmatprep.subr.mxu0 0.0
    %1100 = vmatpush1.msra.mxu0 %v892
    %1101 = vmatprep.subr.mxu0 0.0
    %1102 = vmatpush1.msra.mxu0 %v891
    %1103 = vmatprep.subr.mxu0 0.0
    %1104 = vmatpush1.msra.mxu0 %v890
    %1105 = vmatprep.subr.mxu0 0.0
    %1106 = vmatpush1.msra.mxu0 %v889
    %1107 = vmatprep.subr.mxu0 0.0
    %1108 = vmatpush2.msra.mxu0 0.0
    %1109 = vmatprep.subr.mxu0 0.0
    %1110 = vmatpush2.msra.mxu0 0.0
    %1111 = vmatprep.subr.mxu0 0.0
    %1112 = vmatpush2.msra.mxu0 0.0
    %1113 = vmatprep.subr.mxu0 0.0
    %1114 = vmatpush2.msra.mxu0 0.0
    %1115 = vmatprep.subr.mxu0 0.0
    %1116 = vmatpush2.msra.mxu0 0.0
    %1117 = vmatprep.subr.mxu0 0.0
    %1118 = vmatpush2.msra.mxu0 0.0
    %1119 = vmatprep.subr.mxu0 0.0
    %1120 = vmatpush2.msra.mxu0 0.0
    %1121 = vmatprep.subr.mxu0 0.0
    %1122 = vmatpush2.msra.mxu0 0.0
    %1123 = vmatprep.subr.mxu0 0.0
    %1124 = vmatpush2.msra.mxu0 0.0
    %1125 = vmatprep.subr.mxu0 0.0
    %1126 = vmatpush2.msra.mxu0 0.0
    %1127 = vmatprep.subr.mxu0 0.0
    %1128 = vmatpush2.msra.mxu0 0.0
    %1129 = vmatprep.subr.mxu0 0.0
    %1130 = vmatpush2.msra.mxu0 0.0
    %1131 = vmatprep.subr.mxu0 0.0
    %1132 = vmatpush2.msra.mxu0 0.0
    %1133 = vmatprep.subr.mxu0 0.0
    %1134 = vmatpush2.msra.mxu0 0.0
    %1135 = vmatprep.subr.mxu0 0.0
    %1136 = vmatpush2.msra.mxu0 0.0
    %1137 = vmatprep.subr.mxu0 0.0
    %1138 = vmatpush2.msra.mxu0 0.0
    %1139 = vmatprep.mubr.f32.mxu0 0.0
    %1140 = vmatmul.mubr.f32.gmra.mxu0 %v820
    %v1141 = vpop.f32.mrf.mxu0
    %v1142 = vadd.f32 %v1057, %v1141
    %v1143 = vpop.f32.mrf.mxu0
    %1144 = vmatprep.mubr.f32.mxu0 0.0
    %1145 = vmatmul.mubr.f32.gmra.mxu0 %v821
    %v1146 = vpop.f32.mrf.mxu0
    %v1147 = vadd.f32 %v1062, %v1146
    %v1148 = vpop.f32.mrf.mxu0
    %1149 = vmatprep.mubr.f32.mxu0 0.0
    %1150 = vmatmul.mubr.f32.gmra.mxu0 %v822
    %v1151 = vpop.f32.mrf.mxu0
    %v1152 = vadd.f32 %v1067, %v1151
    %v1153 = vpop.f32.mrf.mxu0
    %1154 = vmatprep.mubr.f32.mxu0 0.0
    %1155 = vmatmul.mubr.f32.gmra.mxu0 %v823
    %v1156 = vpop.f32.mrf.mxu0
    %v1157 = vadd.f32 %v1072, %v1156
    %v1158 = vpop.f32.mrf.mxu0
    %1159 = vdwg.mxu0
    %v1160 = vlaneseq
    %v1161 = vshrl.u32 %v1160, 7
    %v1162 = vsub.s32 2, %v1161
    %v1163 = vrot.slane %v43, %v1162
    %v1164 = vmul.f32 %v1142, %v1163
    %v1165 = vmul.f32 %v1147, %v1163
    %v1166 = vmul.f32 %v1152, %v1163
    %v1167 = vmul.f32 %v1157, %v1163
    %v1168 = vlaneseq
    %v1169 = vshrl.u32 %v1168, 7
    %v1170 = vsub.s32 2, %v1169
    %v1171 = vrot.slane %v44, %v1170
    %v1172 = vadd.f32 %v1164, %v1171
    %v1173 = vadd.f32 %v1165, %v1171
    %v1174 = vadd.f32 %v1166, %v1171
    %v1175 = vadd.f32 %v1167, %v1171
    %1176 = vst [vmem:[%s4] sm:$0xff] %v1172
    %1177 = vst [vmem:[%s4 + $0x8] sm:$0xff] %v1173
    %1178 = vst [vmem:[%s4 + $0x10] sm:$0xff] %v1174
    %1179 = vst [vmem:[%s4 + $0x18] sm:$0xff] %v1175
    // Predicated region
    $region22: #{sodium_pitch_predictor_forward.1} parent=1 // pred_check
      _
    $region23: #{sodium_pitch_predictor_forward.1} parent=1 // pred_check_branch
      %1181 = sbr.rel (0) target = $region25
    $region24: #{sodium_pitch_predictor_forward.1} parent=1 // pred_region
      _
    $region25: #{sodium_pitch_predictor_forward.1} parent=1 // pred_fallthru
      _
    // Predicated region
    $region26: #{sodium_pitch_predictor_forward.1} parent=1 // pred_check
      _
    $region27: #{sodium_pitch_predictor_forward.1} parent=1 // pred_check_branch
      %1183 = sbr.rel (0) target = $region29
    $region28: #{sodium_pitch_predictor_forward.1} parent=1 // pred_region
      _
    $region29: #{sodium_pitch_predictor_forward.1} parent=1 // pred_fallthru
      _
    %1184 = vsyncpa [#allocation4], 1

</llo_original>
